<compile_context>
chip_gen: v5e
topology: v5e:2x2
jax: 0.10.0
libtpu: 0.0.40
codegen_flags: <defaults>
</compile_context>

<pallas_src>
import functools

import jax
import jax.numpy as jnp
from jax.experimental import pallas as pl
from jax.experimental.pallas import tpu as pltpu

EPS = 1e-5
_LANE = 128
_VMEM_LIMIT = 32 * 1024 * 1024   # explicit scoped-VMEM budget (fits v5e/v6e/v7x)


def _round_up(x, m):
    return (x + m - 1) // m * m


def _pad_rows(a, rows):
    return a if a.shape[0] == rows else jnp.pad(a, ((0, rows - a.shape[0]), (0, 0)))


# ---------------------------------------------------------------------------
# Pallas kernels
# ---------------------------------------------------------------------------
def _mm_stats_kernel(x_ref, w_ref, h_ref, stats_ref):
    """1x1 conv as a row-tiled matmul; also emits per-tile (sum, sum_sq) for BN."""
    h = jnp.dot(x_ref[...], w_ref[...], preferred_element_type=jnp.float32)
    h_ref[...] = h
    stats_ref[0:1, :] = jnp.sum(h, axis=0, keepdims=True)
    stats_ref[1:2, :] = jnp.sum(h * h, axis=0, keepdims=True)


def _conv3x3_stats_kernel(xp_ref, w_ref, h_ref, stats_ref):
    """3x3, pad=1, stride=1 conv as 9 accumulating shifted-window matmuls.

    xp_ref: (H+2, W+2, Cin) halo-padded image slab (one batch element).
    w_ref:  (9, Cin, Cout) taps (ky*3 + kx ordering).
    h_ref:  (th*W, Cout) f32 conv output for this row tile.
    stats_ref: (2, Cout) per-tile (sum, sum_sq) for BN.
    """
    wp = xp_ref.shape[1]
    cin = xp_ref.shape[2]
    w = wp - 2
    thw, cout = h_ref.shape
    th = thw // w
    row0 = pl.program_id(1) * th
    acc = jnp.zeros((thw, cout), jnp.float32)
    for dy in range(3):
        for dx in range(3):
            patch = xp_ref[pl.ds(row0 + dy, th), pl.ds(dx, w), :].reshape(thw, cin)
            acc += jnp.dot(patch, w_ref[dy * 3 + dx],
                           preferred_element_type=jnp.float32)
    h_ref[...] = acc
    stats_ref[0:1, :] = jnp.sum(acc, axis=0, keepdims=True)
    stats_ref[1:2, :] = jnp.sum(acc * acc, axis=0, keepdims=True)


def _scale_shift_relu_kernel(h_ref, sc_ref, sh_ref, o_ref):
    y = h_ref[...] * sc_ref[...] + sh_ref[...]
    o_ref[...] = jnp.maximum(y, 0.0).astype(o_ref.dtype)


def _scale_shift_add_relu_kernel(h_ref, sc_ref, sh_ref, res_ref, o_ref):
    y = h_ref[...] * sc_ref[...] + sh_ref[...] + res_ref[...].astype(jnp.float32)
    o_ref[...] = jnp.maximum(y, 0.0).astype(o_ref.dtype)


# ---------------------------------------------------------------------------
# pallas_call wrappers
# ---------------------------------------------------------------------------
def _compiler_params(sem):
    return pltpu.CompilerParams(dimension_semantics=sem,
                                vmem_limit_bytes=_VMEM_LIMIT)


def _matmul_with_stats(x, w, *, tm):
    mp, k = x.shape
    cout = w.shape[1]
    nt = mp // tm
    itemsize = x.dtype.itemsize
    cost = pl.CostEstimate(
        flops=2 * mp * k * cout, transcendentals=0,
        bytes_accessed=(mp * k + k * cout) * itemsize + (mp + 2 * nt) * cout * 4)
    return pl.pallas_call(
        _mm_stats_kernel,
        grid=(nt,),
        in_specs=[pl.BlockSpec((tm, k), lambda i: (i, 0)),
                  pl.BlockSpec((k, cout), lambda i: (0, 0))],
        out_specs=[pl.BlockSpec((tm, cout), lambda i: (i, 0)),
                   pl.BlockSpec((None, 2, cout), lambda i: (i, 0, 0))],
        out_shape=[jax.ShapeDtypeStruct((mp, cout), jnp.float32),
                   jax.ShapeDtypeStruct((nt, 2, cout), jnp.float32)],
        compiler_params=_compiler_params(("parallel",)),
        cost_estimate=cost,
    )(x, w)


def _conv3x3_with_stats(x_img, w_taps, *, th):
    n, h, w, c = x_img.shape
    cout = w_taps.shape[-1]
    nh = h // th
    xp = jnp.pad(x_img, ((0, 0), (1, 1), (1, 1), (0, 0)))   # 1-pixel spatial halo
    hp, wp = h + 2, w + 2
    itemsize = x_img.dtype.itemsize
    cost = pl.CostEstimate(
        flops=2 * 9 * n * h * w * c * cout, transcendentals=0,
        bytes_accessed=(n * hp * wp * c + 9 * c * cout) * itemsize
                       + (n * h * w + n * nh * 2) * cout * 4)
    return pl.pallas_call(
        _conv3x3_stats_kernel,
        grid=(n, nh),
        in_specs=[pl.BlockSpec((None, hp, wp, c), lambda i, j: (i, 0, 0, 0)),
                  pl.BlockSpec((9, c, cout), lambda i, j: (0, 0, 0))],
        out_specs=[pl.BlockSpec((None, th * w, cout), lambda i, j: (i, j, 0)),
                   pl.BlockSpec((None, None, 2, cout), lambda i, j: (i, j, 0, 0))],
        out_shape=[jax.ShapeDtypeStruct((n, h * w, cout), jnp.float32),
                   jax.ShapeDtypeStruct((n, nh, 2, cout), jnp.float32)],
        compiler_params=_compiler_params(("parallel", "parallel")),
        cost_estimate=cost,
    )(xp, w_taps)


def _scale_shift_relu(h, scale, shift, *, tm, out_dtype):
    mp, c = h.shape
    return pl.pallas_call(
        _scale_shift_relu_kernel,
        grid=(mp // tm,),
        in_specs=[pl.BlockSpec((tm, c), lambda i: (i, 0)),
                  pl.BlockSpec((1, c), lambda i: (0, 0)),
                  pl.BlockSpec((1, c), lambda i: (0, 0))],
        out_specs=pl.BlockSpec((tm, c), lambda i: (i, 0)),
        out_shape=jax.ShapeDtypeStruct((mp, c), out_dtype),
        compiler_params=_compiler_params(("parallel",)),
    )(h, scale, shift)


def _scale_shift_add_relu(h, scale, shift, res, *, tm):
    mp, c = h.shape
    return pl.pallas_call(
        _scale_shift_add_relu_kernel,
        grid=(mp // tm,),
        in_specs=[pl.BlockSpec((tm, c), lambda i: (i, 0)),
                  pl.BlockSpec((1, c), lambda i: (0, 0)),
                  pl.BlockSpec((1, c), lambda i: (0, 0)),
                  pl.BlockSpec((tm, c), lambda i: (i, 0))],   # streamed residual tile
        out_specs=pl.BlockSpec((tm, c), lambda i: (i, 0)),
        out_shape=jax.ShapeDtypeStruct((mp, c), jnp.float32),
        compiler_params=_compiler_params(("parallel",)),
    )(h, scale, shift, res)


# ---------------------------------------------------------------------------
# Glue: BN stat finalize, weight prep (done once), Bottleneck forward
# ---------------------------------------------------------------------------
def _bn_scale_shift(stats_sum, count, gamma, beta):
    """Fold global batch stats into per-channel scale/shift (f32, shape (1, C))."""
    mean = stats_sum[0] / count
    var = jnp.maximum(stats_sum[1] / count - mean * mean, 0.0)   # biased (training BN)
    scale = gamma * jax.lax.rsqrt(var + EPS)
    shift = beta - mean * scale
    return scale.reshape(1, -1), shift.reshape(1, -1)


def prepare_params(params, compute_dtype=jnp.bfloat16):
    """One-time weight prep: transpose to matmul layout, zero-pad channels to
    multiples of 128 lanes, cast to the MXU compute dtype."""
    w1 = params["conv1_w"]                       # (Cmid, Cin, 1, 1)  OIHW
    w2 = params["conv2_w"]                       # (Cmid, Cmid, 3, 3)
    w3 = params["conv3_w"]                       # (Cexp, Cmid, 1, 1)
    cmid, cin = w1.shape[0], w1.shape[1]
    cexp = w3.shape[0]
    cin_p, cmid_p, cexp_p = (_round_up(c, _LANE) for c in (cin, cmid, cexp))

    w1m = jnp.transpose(w1[:, :, 0, 0])                                   # (Cin, Cmid)
    w1m = jnp.pad(w1m, ((0, cin_p - cin), (0, cmid_p - cmid))).astype(compute_dtype)
    w2t = jnp.transpose(w2, (2, 3, 1, 0)).reshape(9, cmid, cmid)          # (tap, Cin, Cout)
    w2t = jnp.pad(w2t, ((0, 0), (0, cmid_p - cmid),
                        (0, cmid_p - cmid))).astype(compute_dtype)
    w3m = jnp.transpose(w3[:, :, 0, 0])                                   # (Cmid, Cexp)
    w3m = jnp.pad(w3m, ((0, cmid_p - cmid), (0, cexp_p - cexp))).astype(compute_dtype)

    def padvec(v, cp):
        return jnp.pad(v.astype(jnp.float32), (0, cp - v.shape[0]))

    return {
        "w1m": w1m, "w2t": w2t, "w3m": w3m,
        "bn1_g": padvec(params["bn1_g"], cmid_p), "bn1_b": padvec(params["bn1_b"], cmid_p),
        "bn2_g": padvec(params["bn2_g"], cmid_p), "bn2_b": padvec(params["bn2_b"], cmid_p),
        "bn3_g": padvec(params["bn3_g"], cexp_p), "bn3_b": padvec(params["bn3_b"], cexp_p),
    }


def bottleneck_forward(x_nchw, prep, *, stride=1, block_m=512, block_h=8):
    """Bottleneck forward. NCHW in/out (layout converted once at entry/exit)."""
    if stride != 1:
        # TODO(synk): stride>1 / downsample (1x1 strided conv + BN) branch not implemented.
        raise NotImplementedError("only the identity-skip (stride=1) path is implemented")

    n, cin, h, w = x_nchw.shape
    cd = prep["w1m"].dtype
    cin_p, cmid_p = prep["w1m"].shape
    cexp_p = prep["w3m"].shape[1]
    cexp = cin                                     # identity skip => Cin == expansion*Cout
    assert cin_p == cexp_p, "identity skip requires in_channels == expansion*out_channels"

    m = n * h * w
    tm = _round_up(min(block_m, m), 8)
    mp = _round_up(m, tm)

    # NCHW -> NHWC once; channel-pad to a lane-dense multiple of 128.
    x_nhwc = jnp.transpose(x_nchw, (0, 2, 3, 1))
    x2d_f32 = jnp.pad(x_nhwc, ((0, 0), (0, 0), (0, 0), (0, cin_p - cin))).reshape(m, cin_p)
    x2d = _pad_rows(x2d_f32.astype(cd), mp)
    identity = _pad_rows(x2d_f32, mp)              # f32 residual, streamed per-tile

    # --- conv1 (1x1) + bn1 + relu -------------------------------------------
    h1, st1 = _matmul_with_stats(x2d, prep["w1m"], tm=tm)
    sc1, sh1 = _bn_scale_shift(st1.sum(axis=0), m, prep["bn1_g"], prep["bn1_b"])
    y1 = _scale_shift_relu(h1, sc1, sh1, tm=tm, out_dtype=cd)

    # --- conv2 (3x3, pad=1, stride=1) + bn2 + relu ----------------------------
    y1_img = y1[:m].reshape(n, h, w, cmid_p)
    th = block_h if (h % block_h == 0 and (block_h * w) % 8 == 0) else h
    h2, st2 = _conv3x3_with_stats(y1_img, prep["w2t"], th=th)
    sc2, sh2 = _bn_scale_shift(st2.sum(axis=(0, 1)), m, prep["bn2_g"], prep["bn2_b"])
    h2f = _pad_rows(h2.reshape(m, cmid_p), mp)
    y2 = _scale_shift_relu(h2f, sc2, sh2, tm=tm, out_dtype=cd)
    y2 = _pad_rows(y2[:m], mp)                     # keep padded rows exactly zero for conv3 stats

    # --- conv3 (1x1) + bn3 + residual add + relu ------------------------------
    h3, st3 = _matmul_with_stats(y2, prep["w3m"], tm=tm)
    sc3, sh3 = _bn_scale_shift(st3.sum(axis=0), m, prep["bn3_g"], prep["bn3_b"])
    out2d = _scale_shift_add_relu(h3, sc3, sh3, identity, tm=tm)

    out = out2d[:m, :cexp].reshape(n, h, w, cexp)
    return jnp.transpose(out, (0, 3, 1, 2))        # back to NCHW


# ---------------------------------------------------------------------------
# Pure-JAX reference (same math, XLA convs) for the correctness check
# ---------------------------------------------------------------------------
def reference_forward(x, params, stride=1):
    def conv(x, w, stride=1, pad=0):
        return jax.lax.conv_general_dilated(
            x, w, (stride, stride), [(pad, pad), (pad, pad)],
            dimension_numbers=("NCHW", "OIHW", "NCHW"))

    def bn(x, g, b):
        mean = x.mean(axis=(0, 2, 3), keepdims=True)
        var = ((x - mean) ** 2).mean(axis=(0, 2, 3), keepdims=True)
        return (x - mean) * jax.lax.rsqrt(var + EPS) * g.reshape(1, -1, 1, 1) \
               + b.reshape(1, -1, 1, 1)

    out = jax.nn.relu(bn(conv(x, params["conv1_w"]), params["bn1_g"], params["bn1_b"]))
    out = jax.nn.relu(bn(conv(out, params["conv2_w"], stride=stride, pad=1),
                         params["bn2_g"], params["bn2_b"]))
    out = bn(conv(out, params["conv3_w"]), params["bn3_g"], params["bn3_b"])
    return jax.nn.relu(out + x)


# ---------------------------------------------------------------------------
if __name__ == "__main__":
    # Bottleneck(in_channels=32, out_channels=8), expansion=4, stride=1,
    # downsample=None (so in_channels == out_channels * 4).
    N, H, W = 2, 8, 8
    out_channels = 8
    expansion = 4
    in_channels = out_channels * expansion   # 32
    Cexp = out_channels * expansion

    key = jax.random.PRNGKey(0)
    k1, k2, k3, kx = jax.random.split(key, 4)

    params = {
        "conv1_w": 0.1 * jax.random.normal(k1, (out_channels, in_channels, 1, 1), jnp.float32),
        "conv2_w": 0.1 * jax.random.normal(k2, (out_channels, out_channels, 3, 3), jnp.float32),
        "conv3_w": 0.1 * jax.random.normal(k3, (Cexp, out_channels, 1, 1), jnp.float32),
        "bn1_g": 1.0 + 0.05 * jnp.arange(out_channels, dtype=jnp.float32),
        "bn1_b": 0.01 * jnp.arange(out_channels, dtype=jnp.float32),
        "bn2_g": 1.0 - 0.03 * jnp.arange(out_channels, dtype=jnp.float32),
        "bn2_b": -0.02 * jnp.arange(out_channels, dtype=jnp.float32),
        "bn3_g": 1.0 + 0.02 * jnp.arange(Cexp, dtype=jnp.float32),
        "bn3_b": 0.005 * jnp.arange(Cexp, dtype=jnp.float32),
    }

    x = jax.random.normal(kx, (N, in_channels, H, W), jnp.float32)

    ref = jax.block_until_ready(reference_forward(x, params, stride=1))

    # Small tiles at toy shapes so the multi-tile grid / two-pass BN path is exercised.
    fwd = jax.jit(functools.partial(bottleneck_forward, block_m=64, block_h=4))

    # (1) f32 compute path: tight check of the kernel math against the reference.
    prep_f32 = prepare_params(params, compute_dtype=jnp.float32)
    out_f32 = jax.block_until_ready(fwd(x, prep_f32))
    assert out_f32.shape == (N, Cexp, H, W), out_f32.shape
    err_f32 = float(jnp.max(jnp.abs(out_f32 - ref)))
    assert err_f32 < 5e-3, f"f32 path mismatch vs reference, max abs err = {err_f32}"

    # (2) bf16 MXU path (production default): looser tolerance (bf16 rounding of
    #     activations/weights; accumulation and BN epilogue stay f32).
    prep_bf16 = prepare_params(params, compute_dtype=jnp.bfloat16)
    out_bf16 = jax.block_until_ready(fwd(x, prep_bf16))
    assert out_bf16.shape == (N, Cexp, H, W), out_bf16.shape
    err_bf16 = float(jnp.max(jnp.abs(out_bf16 - ref)))
    assert bool(jnp.allclose(out_bf16, ref, atol=6e-2, rtol=6e-2)), \
        f"bf16 path mismatch vs reference, max abs err = {err_bf16}"

    print("KERNEL_OK")
</pallas_src>

<mosaic_0001>
module attributes {stable_mosaic.version = 11 : i64} {
  func.func @_mm_stats_kernel(%arg0: i32, %arg1: memref<64x128xf32, #tpu.memory_space<vmem>>, %arg2: memref<128x128xf32, #tpu.memory_space<vmem>>, %arg3: memref<64x128xf32, #tpu.memory_space<vmem>>, %arg4: memref<1x2x128xf32, #tpu.memory_space<vmem>>) attributes {dimension_semantics = [#tpu.dimension_semantics<parallel>], iteration_bounds = array<i64: 2>, scalar_prefetch = 0 : i64, scratch_operands = 0 : i64, tpu.core_type = #tpu.core_type<tc>, window_params = [{transform_indices = @transform_0, window_bounds = array<i64: 64, 128>}, {pipeline_mode = #tpu.pipeline_mode<synchronous>, transform_indices = @transform_1, window_bounds = array<i64: 128, 128>}, {transform_indices = @transform_2, window_bounds = array<i64: 64, 128>}, {transform_indices = @transform_3, window_bounds = array<i64: 1, 2, 128>}]} {
    %c0 = arith.constant 0 : index
    %c0_0 = arith.constant 0 : index
    %0 = vector.load %arg1[%c0, %c0_0] : memref<64x128xf32, #tpu.memory_space<vmem>>, vector<64x128xf32>
    %c0_1 = arith.constant 0 : index
    %c0_2 = arith.constant 0 : index
    %1 = vector.load %arg2[%c0_1, %c0_2] : memref<128x128xf32, #tpu.memory_space<vmem>>, vector<128x128xf32>
    %cst = arith.constant dense<0.000000e+00> : vector<64x128xf32>
    %2 = tpu.matmul %0, %1, %cst {dimension_numbers = #tpu.dot_dimension_numbers<[1], [0], [0], [1], [0, 0, 1, 1], [], []>} : vector<64x128xf32>, vector<128x128xf32>, vector<64x128xf32> -> vector<64x128xf32>
    %c0_3 = arith.constant 0 : index
    %c0_4 = arith.constant 0 : index
    %3 = vector.load %arg3[%c0_3, %c0_4] : memref<64x128xf32, #tpu.memory_space<vmem>>, vector<64x128xf32>
    tpu.vector_store %arg3[%c0_3, %c0_4], %2 {strides = array<i32>} : memref<64x128xf32, #tpu.memory_space<vmem>>, vector<64x128xf32>,
    %cst_5 = arith.constant dense<0.000000e+00> : vector<128xf32>
    %4 = vector.multi_reduction <add>, %2, %cst_5 [0] : vector<64x128xf32> to vector<128xf32>
    %5 = vector.shape_cast %4 : vector<128xf32> to vector<1x128xf32>
    %c0_6 = arith.constant 0 : index
    %c0_7 = arith.constant 0 : index
    %c0_8 = arith.constant 0 : index
    %6 = vector.load %arg4[%c0_6, %c0_7, %c0_8] : memref<1x2x128xf32, #tpu.memory_space<vmem>>, vector<1x1x128xf32>
    %7 = vector.shape_cast %6 : vector<1x1x128xf32> to vector<1x128xf32>
    %8 = vector.shape_cast %5 : vector<1x128xf32> to vector<1x1x128xf32>
    tpu.vector_store %arg4[%c0_6, %c0_7, %c0_8], %8 {strides = array<i32>} : memref<1x2x128xf32, #tpu.memory_space<vmem>>, vector<1x1x128xf32>,
    %9 = arith.mulf %2, %2 : vector<64x128xf32>
    %cst_9 = arith.constant dense<0.000000e+00> : vector<128xf32>
    %10 = vector.multi_reduction <add>, %9, %cst_9 [0] : vector<64x128xf32> to vector<128xf32>
    %11 = vector.shape_cast %10 : vector<128xf32> to vector<1x128xf32>
    %c0_10 = arith.constant 0 : index
    %c1 = arith.constant 1 : index
    %c0_11 = arith.constant 0 : index
    %12 = vector.load %arg4[%c0_10, %c1, %c0_11] : memref<1x2x128xf32, #tpu.memory_space<vmem>>, vector<1x1x128xf32>
    %13 = vector.shape_cast %12 : vector<1x1x128xf32> to vector<1x128xf32>
    %14 = vector.shape_cast %11 : vector<1x128xf32> to vector<1x1x128xf32>
    tpu.vector_store %arg4[%c0_10, %c1, %c0_11], %14 {strides = array<i32>} : memref<1x2x128xf32, #tpu.memory_space<vmem>>, vector<1x1x128xf32>,
    return
  }
  func.func @transform_0(%arg0: i32) -> (i32, i32) {
    %c0_i32 = arith.constant 0 : i32
    %c0_i32_0 = arith.constant 0 : i32
    return %arg0, %c0_i32 : i32, i32
  }
  func.func @transform_1(%arg0: i32) -> (i32, i32) {
    %c0_i32 = arith.constant 0 : i32
    %c0_i32_0 = arith.constant 0 : i32
    %c0_i32_1 = arith.constant 0 : i32
    return %c0_i32, %c0_i32_0 : i32, i32
  }
  func.func @transform_2(%arg0: i32) -> (i32, i32) {
    %c0_i32 = arith.constant 0 : i32
    %c0_i32_0 = arith.constant 0 : i32
    return %arg0, %c0_i32 : i32, i32
  }
  func.func @transform_3(%arg0: i32) -> (i32, i32, i32) {
    %c0_i32 = arith.constant 0 : i32
    %c0_i32_0 = arith.constant 0 : i32
    %c0_i32_1 = arith.constant 0 : i32
    return %arg0, %c0_i32, %c0_i32_0 : i32, i32, i32
  }
}

module attributes {stable_mosaic.version = 11 : i64} {
  func.func @_scale_shift_relu_kernel(%arg0: i32, %arg1: memref<64x128xf32, #tpu.memory_space<vmem>>, %arg2: memref<1x128xf32, #tpu.memory_space<vmem>>, %arg3: memref<1x128xf32, #tpu.memory_space<vmem>>, %arg4: memref<64x128xf32, #tpu.memory_space<vmem>>) attributes {dimension_semantics = [#tpu.dimension_semantics<parallel>], iteration_bounds = array<i64: 2>, scalar_prefetch = 0 : i64, scratch_operands = 0 : i64, tpu.core_type = #tpu.core_type<tc>, window_params = [{transform_indices = @transform_0, window_bounds = array<i64: 64, 128>}, {pipeline_mode = #tpu.pipeline_mode<synchronous>, transform_indices = @transform_1, window_bounds = array<i64: 1, 128>}, {pipeline_mode = #tpu.pipeline_mode<synchronous>, transform_indices = @transform_2, window_bounds = array<i64: 1, 128>}, {transform_indices = @transform_3, window_bounds = array<i64: 64, 128>}]} {
    %c0 = arith.constant 0 : index
    %c0_0 = arith.constant 0 : index
    %0 = vector.load %arg1[%c0, %c0_0] : memref<64x128xf32, #tpu.memory_space<vmem>>, vector<64x128xf32>
    %c0_1 = arith.constant 0 : index
    %c0_2 = arith.constant 0 : index
    %1 = vector.load %arg2[%c0_1, %c0_2] : memref<1x128xf32, #tpu.memory_space<vmem>>, vector<1x128xf32>
    %2 = vector.broadcast %1 : vector<1x128xf32> to vector<64x128xf32>
    %3 = arith.mulf %0, %2 : vector<64x128xf32>
    %c0_3 = arith.constant 0 : index
    %c0_4 = arith.constant 0 : index
    %4 = vector.load %arg3[%c0_3, %c0_4] : memref<1x128xf32, #tpu.memory_space<vmem>>, vector<1x128xf32>
    %5 = vector.broadcast %4 : vector<1x128xf32> to vector<64x128xf32>
    %6 = arith.addf %3, %5 : vector<64x128xf32>
    %cst = arith.constant 0.000000e+00 : f32
    %7 = vector.broadcast %cst : f32 to vector<64x128xf32>
    %8 = arith.maximumf %6, %7 : vector<64x128xf32>
    %c0_5 = arith.constant 0 : index
    %c0_6 = arith.constant 0 : index
    %9 = vector.load %arg4[%c0_5, %c0_6] : memref<64x128xf32, #tpu.memory_space<vmem>>, vector<64x128xf32>
    tpu.vector_store %arg4[%c0_5, %c0_6], %8 {strides = array<i32>} : memref<64x128xf32, #tpu.memory_space<vmem>>, vector<64x128xf32>,
    return
  }
  func.func @transform_0(%arg0: i32) -> (i32, i32) {
    %c0_i32 = arith.constant 0 : i32
    %c0_i32_0 = arith.constant 0 : i32
    return %arg0, %c0_i32 : i32, i32
  }
  func.func @transform_1(%arg0: i32) -> (i32, i32) {
    %c0_i32 = arith.constant 0 : i32
    %c0_i32_0 = arith.constant 0 : i32
    %c0_i32_1 = arith.constant 0 : i32
    return %c0_i32, %c0_i32_0 : i32, i32
  }
  func.func @transform_2(%arg0: i32) -> (i32, i32) {
    %c0_i32 = arith.constant 0 : i32
    %c0_i32_0 = arith.constant 0 : i32
    %c0_i32_1 = arith.constant 0 : i32
    return %c0_i32, %c0_i32_0 : i32, i32
  }
  func.func @transform_3(%arg0: i32) -> (i32, i32) {
    %c0_i32 = arith.constant 0 : i32
    %c0_i32_0 = arith.constant 0 : i32
    return %arg0, %c0_i32 : i32, i32
  }
}

module attributes {stable_mosaic.version = 11 : i64} {
  func.func @_conv3x3_stats_kernel(%arg0: i32, %arg1: i32, %arg2: memref<1x10x10x128xf32, #tpu.memory_space<vmem>>, %arg3: memref<9x128x128xf32, #tpu.memory_space<vmem>>, %arg4: memref<1x32x128xf32, #tpu.memory_space<vmem>>, %arg5: memref<1x1x2x128xf32, #tpu.memory_space<vmem>>) attributes {dimension_semantics = [#tpu.dimension_semantics<parallel>, #tpu.dimension_semantics<parallel>], iteration_bounds = array<i64: 2, 2>, scalar_prefetch = 0 : i64, scratch_operands = 0 : i64, tpu.core_type = #tpu.core_type<tc>, window_params = [{transform_indices = @transform_0, window_bounds = array<i64: 1, 10, 10, 128>}, {pipeline_mode = #tpu.pipeline_mode<synchronous>, transform_indices = @transform_1, window_bounds = array<i64: 9, 128, 128>}, {transform_indices = @transform_2, window_bounds = array<i64: 1, 32, 128>}, {transform_indices = @transform_3, window_bounds = array<i64: 1, 1, 2, 128>}]} {
    %c4_i32 = arith.constant 4 : i32
    %0 = arith.muli %arg1, %c4_i32 : i32
    %cst = arith.constant 0.000000e+00 : f32
    %1 = vector.broadcast %cst : f32 to vector<32x128xf32>
    %c0_i32 = arith.constant 0 : i32
    %2 = arith.addi %0, %c0_i32 : i32
    %c0 = arith.constant 0 : index
    %3 = arith.index_cast %2 : i32 to index
    %c0_0 = arith.constant 0 : index
    %c0_1 = arith.constant 0 : index
    %4 = vector.load %arg2[%c0, %3, %c0_0, %c0_1] : memref<1x10x10x128xf32, #tpu.memory_space<vmem>>, vector<1x4x8x128xf32>
    %5 = vector.shape_cast %4 : vector<1x4x8x128xf32> to vector<4x8x128xf32>
    %6 = vector.shape_cast %5 : vector<4x8x128xf32> to vector<32x128xf32>
    %c0_2 = arith.constant 0 : index
    %c0_3 = arith.constant 0 : index
    %c0_4 = arith.constant 0 : index
    %7 = vector.load %arg3[%c0_2, %c0_3, %c0_4] : memref<9x128x128xf32, #tpu.memory_space<vmem>>, vector<1x128x128xf32>
    %8 = vector.shape_cast %7 : vector<1x128x128xf32> to vector<128x128xf32>
    %cst_5 = arith.constant dense<0.000000e+00> : vector<32x128xf32>
    %9 = tpu.matmul %6, %8, %cst_5 {dimension_numbers = #tpu.dot_dimension_numbers<[1], [0], [0], [1], [0, 0, 1, 1], [], []>} : vector<32x128xf32>, vector<128x128xf32>, vector<32x128xf32> -> vector<32x128xf32>
    %10 = arith.addf %1, %9 : vector<32x128xf32>
    %c0_i32_6 = arith.constant 0 : i32
    %11 = arith.addi %0, %c0_i32_6 : i32
    %c0_7 = arith.constant 0 : index
    %12 = arith.index_cast %11 : i32 to index
    %c1 = arith.constant 1 : index
    %c0_8 = arith.constant 0 : index
    %13 = vector.load %arg2[%c0_7, %12, %c1, %c0_8] : memref<1x10x10x128xf32, #tpu.memory_space<vmem>>, vector<1x4x8x128xf32>
    %14 = vector.shape_cast %13 : vector<1x4x8x128xf32> to vector<4x8x128xf32>
    %15 = vector.shape_cast %14 : vector<4x8x128xf32> to vector<32x128xf32>
    %c1_9 = arith.constant 1 : index
    %c0_10 = arith.constant 0 : index
    %c0_11 = arith.constant 0 : index
    %16 = vector.load %arg3[%c1_9, %c0_10, %c0_11] : memref<9x128x128xf32, #tpu.memory_space<vmem>>, vector<1x128x128xf32>
    %17 = vector.shape_cast %16 : vector<1x128x128xf32> to vector<128x128xf32>
    %cst_12 = arith.constant dense<0.000000e+00> : vector<32x128xf32>
    %18 = tpu.matmul %15, %17, %cst_12 {dimension_numbers = #tpu.dot_dimension_numbers<[1], [0], [0], [1], [0, 0, 1, 1], [], []>} : vector<32x128xf32>, vector<128x128xf32>, vector<32x128xf32> -> vector<32x128xf32>
    %19 = arith.addf %10, %18 : vector<32x128xf32>
    %c0_i32_13 = arith.constant 0 : i32
    %20 = arith.addi %0, %c0_i32_13 : i32
    %c0_14 = arith.constant 0 : index
    %21 = arith.index_cast %20 : i32 to index
    %c2 = arith.constant 2 : index
    %c0_15 = arith.constant 0 : index
    %22 = vector.load %arg2[%c0_14, %21, %c2, %c0_15] : memref<1x10x10x128xf32, #tpu.memory_space<vmem>>, vector<1x4x8x128xf32>
    %23 = vector.shape_cast %22 : vector<1x4x8x128xf32> to vector<4x8x128xf32>
    %24 = vector.shape_cast %23 : vector<4x8x128xf32> to vector<32x128xf32>
    %c2_16 = arith.constant 2 : index
    %c0_17 = arith.constant 0 : index
    %c0_18 = arith.constant 0 : index
    %25 = vector.load %arg3[%c2_16, %c0_17, %c0_18] : memref<9x128x128xf32, #tpu.memory_space<vmem>>, vector<1x128x128xf32>
    %26 = vector.shape_cast %25 : vector<1x128x128xf32> to vector<128x128xf32>
    %cst_19 = arith.constant dense<0.000000e+00> : vector<32x128xf32>
    %27 = tpu.matmul %24, %26, %cst_19 {dimension_numbers = #tpu.dot_dimension_numbers<[1], [0], [0], [1], [0, 0, 1, 1], [], []>} : vector<32x128xf32>, vector<128x128xf32>, vector<32x128xf32> -> vector<32x128xf32>
    %28 = arith.addf %19, %27 : vector<32x128xf32>
    %c1_i32 = arith.constant 1 : i32
    %29 = arith.addi %0, %c1_i32 : i32
    %c0_20 = arith.constant 0 : index
    %30 = arith.index_cast %29 : i32 to index
    %c0_21 = arith.constant 0 : index
    %c0_22 = arith.constant 0 : index
    %31 = vector.load %arg2[%c0_20, %30, %c0_21, %c0_22] : memref<1x10x10x128xf32, #tpu.memory_space<vmem>>, vector<1x4x8x128xf32>
    %32 = vector.shape_cast %31 : vector<1x4x8x128xf32> to vector<4x8x128xf32>
    %33 = vector.shape_cast %32 : vector<4x8x128xf32> to vector<32x128xf32>
    %c3 = arith.constant 3 : index
    %c0_23 = arith.constant 0 : index
    %c0_24 = arith.constant 0 : index
    %34 = vector.load %arg3[%c3, %c0_23, %c0_24] : memref<9x128x128xf32, #tpu.memory_space<vmem>>, vector<1x128x128xf32>
    %35 = vector.shape_cast %34 : vector<1x128x128xf32> to vector<128x128xf32>
    %cst_25 = arith.constant dense<0.000000e+00> : vector<32x128xf32>
    %36 = tpu.matmul %33, %35, %cst_25 {dimension_numbers = #tpu.dot_dimension_numbers<[1], [0], [0], [1], [0, 0, 1, 1], [], []>} : vector<32x128xf32>, vector<128x128xf32>, vector<32x128xf32> -> vector<32x128xf32>
    %37 = arith.addf %28, %36 : vector<32x128xf32>
    %c1_i32_26 = arith.constant 1 : i32
    %38 = arith.addi %0, %c1_i32_26 : i32
    %c0_27 = arith.constant 0 : index
    %39 = arith.index_cast %38 : i32 to index
    %c1_28 = arith.constant 1 : index
    %c0_29 = arith.constant 0 : index
    %40 = vector.load %arg2[%c0_27, %39, %c1_28, %c0_29] : memref<1x10x10x128xf32, #tpu.memory_space<vmem>>, vector<1x4x8x128xf32>
    %41 = vector.shape_cast %40 : vector<1x4x8x128xf32> to vector<4x8x128xf32>
    %42 = vector.shape_cast %41 : vector<4x8x128xf32> to vector<32x128xf32>
    %c4 = arith.constant 4 : index
    %c0_30 = arith.constant 0 : index
    %c0_31 = arith.constant 0 : index
    %43 = vector.load %arg3[%c4, %c0_30, %c0_31] : memref<9x128x128xf32, #tpu.memory_space<vmem>>, vector<1x128x128xf32>
    %44 = vector.shape_cast %43 : vector<1x128x128xf32> to vector<128x128xf32>
    %cst_32 = arith.constant dense<0.000000e+00> : vector<32x128xf32>
    %45 = tpu.matmul %42, %44, %cst_32 {dimension_numbers = #tpu.dot_dimension_numbers<[1], [0], [0], [1], [0, 0, 1, 1], [], []>} : vector<32x128xf32>, vector<128x128xf32>, vector<32x128xf32> -> vector<32x128xf32>
    %46 = arith.addf %37, %45 : vector<32x128xf32>
    %c1_i32_33 = arith.constant 1 : i32
    %47 = arith.addi %0, %c1_i32_33 : i32
    %c0_34 = arith.constant 0 : index
    %48 = arith.index_cast %47 : i32 to index
    %c2_35 = arith.constant 2 : index
    %c0_36 = arith.constant 0 : index
    %49 = vector.load %arg2[%c0_34, %48, %c2_35, %c0_36] : memref<1x10x10x128xf32, #tpu.memory_space<vmem>>, vector<1x4x8x128xf32>
    %50 = vector.shape_cast %49 : vector<1x4x8x128xf32> to vector<4x8x128xf32>
    %51 = vector.shape_cast %50 : vector<4x8x128xf32> to vector<32x128xf32>
    %c5 = arith.constant 5 : index
    %c0_37 = arith.constant 0 : index
    %c0_38 = arith.constant 0 : index
    %52 = vector.load %arg3[%c5, %c0_37, %c0_38] : memref<9x128x128xf32, #tpu.memory_space<vmem>>, vector<1x128x128xf32>
    %53 = vector.shape_cast %52 : vector<1x128x128xf32> to vector<128x128xf32>
    %cst_39 = arith.constant dense<0.000000e+00> : vector<32x128xf32>
    %54 = tpu.matmul %51, %53, %cst_39 {dimension_numbers = #tpu.dot_dimension_numbers<[1], [0], [0], [1], [0, 0, 1, 1], [], []>} : vector<32x128xf32>, vector<128x128xf32>, vector<32x128xf32> -> vector<32x128xf32>
    %55 = arith.addf %46, %54 : vector<32x128xf32>
    %c2_i32 = arith.constant 2 : i32
    %56 = arith.addi %0, %c2_i32 : i32
    %c0_40 = arith.constant 0 : index
    %57 = arith.index_cast %56 : i32 to index
    %c0_41 = arith.constant 0 : index
    %c0_42 = arith.constant 0 : index
    %58 = vector.load %arg2[%c0_40, %57, %c0_41, %c0_42] : memref<1x10x10x128xf32, #tpu.memory_space<vmem>>, vector<1x4x8x128xf32>
    %59 = vector.shape_cast %58 : vector<1x4x8x128xf32> to vector<4x8x128xf32>
    %60 = vector.shape_cast %59 : vector<4x8x128xf32> to vector<32x128xf32>
    %c6 = arith.constant 6 : index
    %c0_43 = arith.constant 0 : index
    %c0_44 = arith.constant 0 : index
    %61 = vector.load %arg3[%c6, %c0_43, %c0_44] : memref<9x128x128xf32, #tpu.memory_space<vmem>>, vector<1x128x128xf32>
    %62 = vector.shape_cast %61 : vector<1x128x128xf32> to vector<128x128xf32>
    %cst_45 = arith.constant dense<0.000000e+00> : vector<32x128xf32>
    %63 = tpu.matmul %60, %62, %cst_45 {dimension_numbers = #tpu.dot_dimension_numbers<[1], [0], [0], [1], [0, 0, 1, 1], [], []>} : vector<32x128xf32>, vector<128x128xf32>, vector<32x128xf32> -> vector<32x128xf32>
    %64 = arith.addf %55, %63 : vector<32x128xf32>
    %c2_i32_46 = arith.constant 2 : i32
    %65 = arith.addi %0, %c2_i32_46 : i32
    %c0_47 = arith.constant 0 : index
    %66 = arith.index_cast %65 : i32 to index
    %c1_48 = arith.constant 1 : index
    %c0_49 = arith.constant 0 : index
    %67 = vector.load %arg2[%c0_47, %66, %c1_48, %c0_49] : memref<1x10x10x128xf32, #tpu.memory_space<vmem>>, vector<1x4x8x128xf32>
    %68 = vector.shape_cast %67 : vector<1x4x8x128xf32> to vector<4x8x128xf32>
    %69 = vector.shape_cast %68 : vector<4x8x128xf32> to vector<32x128xf32>
    %c7 = arith.constant 7 : index
    %c0_50 = arith.constant 0 : index
    %c0_51 = arith.constant 0 : index
    %70 = vector.load %arg3[%c7, %c0_50, %c0_51] : memref<9x128x128xf32, #tpu.memory_space<vmem>>, vector<1x128x128xf32>
    %71 = vector.shape_cast %70 : vector<1x128x128xf32> to vector<128x128xf32>
    %cst_52 = arith.constant dense<0.000000e+00> : vector<32x128xf32>
    %72 = tpu.matmul %69, %71, %cst_52 {dimension_numbers = #tpu.dot_dimension_numbers<[1], [0], [0], [1], [0, 0, 1, 1], [], []>} : vector<32x128xf32>, vector<128x128xf32>, vector<32x128xf32> -> vector<32x128xf32>
    %73 = arith.addf %64, %72 : vector<32x128xf32>
    %c2_i32_53 = arith.constant 2 : i32
    %74 = arith.addi %0, %c2_i32_53 : i32
    %c0_54 = arith.constant 0 : index
    %75 = arith.index_cast %74 : i32 to index
    %c2_55 = arith.constant 2 : index
    %c0_56 = arith.constant 0 : index
    %76 = vector.load %arg2[%c0_54, %75, %c2_55, %c0_56] : memref<1x10x10x128xf32, #tpu.memory_space<vmem>>, vector<1x4x8x128xf32>
    %77 = vector.shape_cast %76 : vector<1x4x8x128xf32> to vector<4x8x128xf32>
    %78 = vector.shape_cast %77 : vector<4x8x128xf32> to vector<32x128xf32>
    %c8 = arith.constant 8 : index
    %c0_57 = arith.constant 0 : index
    %c0_58 = arith.constant 0 : index
    %79 = vector.load %arg3[%c8, %c0_57, %c0_58] : memref<9x128x128xf32, #tpu.memory_space<vmem>>, vector<1x128x128xf32>
    %80 = vector.shape_cast %79 : vector<1x128x128xf32> to vector<128x128xf32>
    %cst_59 = arith.constant dense<0.000000e+00> : vector<32x128xf32>
    %81 = tpu.matmul %78, %80, %cst_59 {dimension_numbers = #tpu.dot_dimension_numbers<[1], [0], [0], [1], [0, 0, 1, 1], [], []>} : vector<32x128xf32>, vector<128x128xf32>, vector<32x128xf32> -> vector<32x128xf32>
    %82 = arith.addf %73, %81 : vector<32x128xf32>
    %c0_60 = arith.constant 0 : index
    %c0_61 = arith.constant 0 : index
    %c0_62 = arith.constant 0 : index
    %83 = vector.load %arg4[%c0_60, %c0_61, %c0_62] : memref<1x32x128xf32, #tpu.memory_space<vmem>>, vector<1x32x128xf32>
    %84 = vector.shape_cast %83 : vector<1x32x128xf32> to vector<32x128xf32>
    %85 = vector.shape_cast %82 : vector<32x128xf32> to vector<1x32x128xf32>
    tpu.vector_store %arg4[%c0_60, %c0_61, %c0_62], %85 {strides = array<i32>} : memref<1x32x128xf32, #tpu.memory_space<vmem>>, vector<1x32x128xf32>,
    %cst_63 = arith.constant dense<0.000000e+00> : vector<128xf32>
    %86 = vector.multi_reduction <add>, %82, %cst_63 [0] : vector<32x128xf32> to vector<128xf32>
    %87 = vector.shape_cast %86 : vector<128xf32> to vector<1x128xf32>
    %c0_64 = arith.constant 0 : index
    %c0_65 = arith.constant 0 : index
    %c0_66 = arith.constant 0 : index
    %c0_67 = arith.constant 0 : index
    %88 = vector.load %arg5[%c0_64, %c0_65, %c0_66, %c0_67] : memref<1x1x2x128xf32, #tpu.memory_space<vmem>>, vector<1x1x1x128xf32>
    %89 = vector.shape_cast %88 : vector<1x1x1x128xf32> to vector<1x128xf32>
    %90 = vector.shape_cast %87 : vector<1x128xf32> to vector<1x1x1x128xf32>
    tpu.vector_store %arg5[%c0_64, %c0_65, %c0_66, %c0_67], %90 {strides = array<i32>} : memref<1x1x2x128xf32, #tpu.memory_space<vmem>>, vector<1x1x1x128xf32>,
    %91 = arith.mulf %82, %82 : vector<32x128xf32>
    %cst_68 = arith.constant dense<0.000000e+00> : vector<128xf32>
    %92 = vector.multi_reduction <add>, %91, %cst_68 [0] : vector<32x128xf32> to vector<128xf32>
    %93 = vector.shape_cast %92 : vector<128xf32> to vector<1x128xf32>
    %c0_69 = arith.constant 0 : index
    %c0_70 = arith.constant 0 : index
    %c1_71 = arith.constant 1 : index
    %c0_72 = arith.constant 0 : index
    %94 = vector.load %arg5[%c0_69, %c0_70, %c1_71, %c0_72] : memref<1x1x2x128xf32, #tpu.memory_space<vmem>>, vector<1x1x1x128xf32>
    %95 = vector.shape_cast %94 : vector<1x1x1x128xf32> to vector<1x128xf32>
    %96 = vector.shape_cast %93 : vector<1x128xf32> to vector<1x1x1x128xf32>
    tpu.vector_store %arg5[%c0_69, %c0_70, %c1_71, %c0_72], %96 {strides = array<i32>} : memref<1x1x2x128xf32, #tpu.memory_space<vmem>>, vector<1x1x1x128xf32>,
    return
  }
  func.func @transform_0(%arg0: i32, %arg1: i32) -> (i32, i32, i32, i32) {
    %c0_i32 = arith.constant 0 : i32
    %c0_i32_0 = arith.constant 0 : i32
    %c0_i32_1 = arith.constant 0 : i32
    %c0_i32_2 = arith.constant 0 : i32
    return %arg0, %c0_i32, %c0_i32_0, %c0_i32_1 : i32, i32, i32, i32
  }
  func.func @transform_1(%arg0: i32, %arg1: i32) -> (i32, i32, i32) {
    %c0_i32 = arith.constant 0 : i32
    %c0_i32_0 = arith.constant 0 : i32
    %c0_i32_1 = arith.constant 0 : i32
    %c0_i32_2 = arith.constant 0 : i32
    return %c0_i32, %c0_i32_0, %c0_i32_1 : i32, i32, i32
  }
  func.func @transform_2(%arg0: i32, %arg1: i32) -> (i32, i32, i32) {
    %c0_i32 = arith.constant 0 : i32
    %c0_i32_0 = arith.constant 0 : i32
    return %arg0, %arg1, %c0_i32 : i32, i32, i32
  }
  func.func @transform_3(%arg0: i32, %arg1: i32) -> (i32, i32, i32, i32) {
    %c0_i32 = arith.constant 0 : i32
    %c0_i32_0 = arith.constant 0 : i32
    %c0_i32_1 = arith.constant 0 : i32
    return %arg0, %arg1, %c0_i32, %c0_i32_0 : i32, i32, i32, i32
  }
}

module attributes {stable_mosaic.version = 11 : i64} {
  func.func @_scale_shift_add_relu_kernel(%arg0: i32, %arg1: memref<64x128xf32, #tpu.memory_space<vmem>>, %arg2: memref<1x128xf32, #tpu.memory_space<vmem>>, %arg3: memref<1x128xf32, #tpu.memory_space<vmem>>, %arg4: memref<64x128xf32, #tpu.memory_space<vmem>>, %arg5: memref<64x128xf32, #tpu.memory_space<vmem>>) attributes {dimension_semantics = [#tpu.dimension_semantics<parallel>], iteration_bounds = array<i64: 2>, scalar_prefetch = 0 : i64, scratch_operands = 0 : i64, tpu.core_type = #tpu.core_type<tc>, window_params = [{transform_indices = @transform_0, window_bounds = array<i64: 64, 128>}, {pipeline_mode = #tpu.pipeline_mode<synchronous>, transform_indices = @transform_1, window_bounds = array<i64: 1, 128>}, {pipeline_mode = #tpu.pipeline_mode<synchronous>, transform_indices = @transform_2, window_bounds = array<i64: 1, 128>}, {transform_indices = @transform_3, window_bounds = array<i64: 64, 128>}, {transform_indices = @transform_4, window_bounds = array<i64: 64, 128>}]} {
    %c0 = arith.constant 0 : index
    %c0_0 = arith.constant 0 : index
    %0 = vector.load %arg1[%c0, %c0_0] : memref<64x128xf32, #tpu.memory_space<vmem>>, vector<64x128xf32>
    %c0_1 = arith.constant 0 : index
    %c0_2 = arith.constant 0 : index
    %1 = vector.load %arg2[%c0_1, %c0_2] : memref<1x128xf32, #tpu.memory_space<vmem>>, vector<1x128xf32>
    %2 = vector.broadcast %1 : vector<1x128xf32> to vector<64x128xf32>
    %3 = arith.mulf %0, %2 : vector<64x128xf32>
    %c0_3 = arith.constant 0 : index
    %c0_4 = arith.constant 0 : index
    %4 = vector.load %arg3[%c0_3, %c0_4] : memref<1x128xf32, #tpu.memory_space<vmem>>, vector<1x128xf32>
    %5 = vector.broadcast %4 : vector<1x128xf32> to vector<64x128xf32>
    %6 = arith.addf %3, %5 : vector<64x128xf32>
    %c0_5 = arith.constant 0 : index
    %c0_6 = arith.constant 0 : index
    %7 = vector.load %arg4[%c0_5, %c0_6] : memref<64x128xf32, #tpu.memory_space<vmem>>, vector<64x128xf32>
    %8 = arith.addf %6, %7 : vector<64x128xf32>
    %cst = arith.constant 0.000000e+00 : f32
    %9 = vector.broadcast %cst : f32 to vector<64x128xf32>
    %10 = arith.maximumf %8, %9 : vector<64x128xf32>
    %c0_7 = arith.constant 0 : index
    %c0_8 = arith.constant 0 : index
    %11 = vector.load %arg5[%c0_7, %c0_8] : memref<64x128xf32, #tpu.memory_space<vmem>>, vector<64x128xf32>
    tpu.vector_store %arg5[%c0_7, %c0_8], %10 {strides = array<i32>} : memref<64x128xf32, #tpu.memory_space<vmem>>, vector<64x128xf32>,
    return
  }
  func.func @transform_0(%arg0: i32) -> (i32, i32) {
    %c0_i32 = arith.constant 0 : i32
    %c0_i32_0 = arith.constant 0 : i32
    return %arg0, %c0_i32 : i32, i32
  }
  func.func @transform_1(%arg0: i32) -> (i32, i32) {
    %c0_i32 = arith.constant 0 : i32
    %c0_i32_0 = arith.constant 0 : i32
    %c0_i32_1 = arith.constant 0 : i32
    return %c0_i32, %c0_i32_0 : i32, i32
  }
  func.func @transform_2(%arg0: i32) -> (i32, i32) {
    %c0_i32 = arith.constant 0 : i32
    %c0_i32_0 = arith.constant 0 : i32
    %c0_i32_1 = arith.constant 0 : i32
    return %c0_i32, %c0_i32_0 : i32, i32
  }
  func.func @transform_3(%arg0: i32) -> (i32, i32) {
    %c0_i32 = arith.constant 0 : i32
    %c0_i32_0 = arith.constant 0 : i32
    return %arg0, %c0_i32 : i32, i32
  }
  func.func @transform_4(%arg0: i32) -> (i32, i32) {
    %c0_i32 = arith.constant 0 : i32
    %c0_i32_0 = arith.constant 0 : i32
    return %arg0, %c0_i32 : i32, i32
  }
}

</mosaic_0001>

<llo_original>
// kernel: bottleneck_forward.7
$region0: #{bottleneck_forward.7}
  #allocation0 [shape = 'u32[]', space=smem, size = 0x4, offset = 0x4, fixed_abs, tag = 'smem constant byte address 0x4 - core index']
  #allocation1 [shape = 'u32[72,128]{1,0:T(1,128)}', space=vmem, size = 0x9000, scoped, tag = 'internal scratch']
  %s0 = inlined_call_operand.vmem [shape: f32[128,128], index: 0, kind: input, shape index: {}]
  %s1 = inlined_call_operand.vmem [shape: f32[1,128], index: 1, kind: input, shape index: {}]
  %s2 = inlined_call_operand.vmem [shape: f32[1,128], index: 2, kind: input, shape index: {}]
  %s3 = inlined_call_operand.vmem [shape: f32[128,128], index: 3, kind: output, shape index: {}]
  %s4 = sld [smem:[#allocation0]]
  $region45: #{bottleneck_forward.7} parent=0
    _
  %s6 = ssub.s32 1, %s4
  %s7 = scalar_select 0, %s6, %s4
  loop: start=0, step=1, limit=4
  $region2: #{bottleneck_forward.7} parent=0 // loop_pre_header
    _
  $region3: #{bottleneck_forward.7} parent=0 // loop_header
    %s9 = sphi 0, %s13
    %p10 = scmp.ge.s32.totalorder %s9, 4
    %s19 = sphi 0, %s21
    %s22 = sphi 0, %s19
    %s23 = sphi 0, %s22
    %s39 = sphi 0, %s23
    %s43 = sphi 0, %s43
    %s45 = sphi 0, %s43
    %s46 = sphi 0, %s45
    %s60 = sphi 0, %s46
    %s64 = sphi 0, %s64
    %s66 = sphi 0, %s64
    %s67 = sphi 0, %s66
    %s81 = sphi 0, %s67
    %s87 = sphi 0, %s89
    %s90 = sphi 0, %s87
    %s91 = sphi 0, %s90
    %s107 = sphi 0, %s91
  $region4: #{bottleneck_forward.7} parent=0 // loop_header_branch
    %12 = sbr.rel (%p10) target = $region8
  $region5: #{bottleneck_forward.7} parent=0 // loop_body
    %s14 = ssub.s32 %s9, 1
    %s15 = ssub.s32 %s9, 2
    %s16 = sadd.s32 %s9, 1
    %s17 = ssub.s32 %s9, %s16
    %p18 = scmp.eq.s32.totalorder %s17, 0
    %s20 = sadd.s32 %s19, 1
    %s21 = scalar_select %p18, %s19, %s20
    %p24 = pneg %p18
    %p25 = scmp.eq.s32.totalorder %s9, 1
    %p26 = por %p24, %p25
    %p27 = scmp.ne.s32.totalorder %s19, %s22
    %p28 = scmp.eq.s32.totalorder %s9, 0
    %p29 = por %p27, %p28
    %p30 = scmp.ne.s32.totalorder %s19, %s22
    %p31 = scmp.eq.s32.totalorder %s14, 1
    %p32 = por %p30, %p31
    %p33 = scmp.ne.s32.totalorder %s22, %s23
    %p34 = scmp.eq.s32.totalorder %s14, 0
    %p35 = por %p33, %p34
    %p36 = scmp.ne.s32.totalorder %s22, %s23
    %p37 = scmp.eq.s32.totalorder %s15, 1
    %p38 = por %p36, %p37
    %p40 = scmp.ne.s32.totalorder %s23, %s39
    %p41 = scmp.eq.s32.totalorder %s15, 0
    %p42 = por %p40, %p41
    %s44 = sadd.s32 %s43, 1
    %p47 = scmp.eq.s32.totalorder %s9, 1
    %p48 = scmp.ne.s32.totalorder %s43, %s45
    %p49 = scmp.eq.s32.totalorder %s9, 0
    %p50 = por %p48, %p49
    %p51 = scmp.ne.s32.totalorder %s43, %s45
    %p52 = scmp.eq.s32.totalorder %s14, 1
    %p53 = por %p51, %p52
    %p54 = scmp.ne.s32.totalorder %s45, %s46
    %p55 = scmp.eq.s32.totalorder %s14, 0
    %p56 = por %p54, %p55
    %p57 = scmp.ne.s32.totalorder %s45, %s46
    %p58 = scmp.eq.s32.totalorder %s15, 1
    %p59 = por %p57, %p58
    %p61 = scmp.ne.s32.totalorder %s46, %s60
    %p62 = scmp.eq.s32.totalorder %s15, 0
    %p63 = por %p61, %p62
    %s65 = sadd.s32 %s64, 1
    %p68 = scmp.eq.s32.totalorder %s9, 1
    %p69 = scmp.ne.s32.totalorder %s64, %s66
    %p70 = scmp.eq.s32.totalorder %s9, 0
    %p71 = por %p69, %p70
    %p72 = scmp.ne.s32.totalorder %s64, %s66
    %p73 = scmp.eq.s32.totalorder %s14, 1
    %p74 = por %p72, %p73
    %p75 = scmp.ne.s32.totalorder %s66, %s67
    %p76 = scmp.eq.s32.totalorder %s14, 0
    %p77 = por %p75, %p76
    %p78 = scmp.ne.s32.totalorder %s66, %s67
    %p79 = scmp.eq.s32.totalorder %s15, 1
    %p80 = por %p78, %p79
    %p82 = scmp.ne.s32.totalorder %s67, %s81
    %p83 = scmp.eq.s32.totalorder %s15, 0
    %p84 = por %p82, %p83
    %s85 = ssub.s32 %s9, %s16
    %p86 = scmp.eq.s32.totalorder %s85, 0
    %s88 = sadd.s32 %s87, 1
    %s89 = scalar_select %p86, %s87, %s88
    %p92 = pneg %p86
    %p93 = scmp.eq.s32.totalorder %s9, 1
    %p94 = por %p92, %p93
    %p95 = scmp.ne.s32.totalorder %s87, %s90
    %p96 = scmp.eq.s32.totalorder %s9, 0
    %p97 = por %p95, %p96
    %p98 = scmp.ne.s32.totalorder %s87, %s90
    %p99 = scmp.eq.s32.totalorder %s14, 1
    %p100 = por %p98, %p99
    %p101 = scmp.ne.s32.totalorder %s90, %s91
    %p102 = scmp.eq.s32.totalorder %s14, 0
    %p103 = por %p101, %p102
    %p104 = scmp.ne.s32.totalorder %s90, %s91
    %p105 = scmp.eq.s32.totalorder %s15, 1
    %p106 = por %p104, %p105
    %p108 = scmp.ne.s32.totalorder %s91, %s107
    %p109 = scmp.eq.s32.totalorder %s15, 0
    %p110 = por %p108, %p109
    %p111 = scmp.le.s32.totalorder 1, %s9
    %p112 = scmp.lt.s32.totalorder %s9, 3
    %p113 = pnand %p111, %p112
    %p114 = pneg %p113
    // Predicated region
    $region9: #{bottleneck_forward.7} parent=5 // pred_check
      _
    $region10: #{bottleneck_forward.7} parent=5 // pred_check_branch
      %116 = sbr.rel (%p113) target = $region12
    $region11: #{bottleneck_forward.7} parent=5 // pred_region
      %s117 = ssub.s32 %s9, 1
      // Predicated region
      $region13: #{bottleneck_forward.7} parent=11 // pred_check
        %p118 = pneg %p56
      $region14: #{bottleneck_forward.7} parent=11 // pred_check_branch
        %120 = sbr.rel (%p118) target = $region16
      $region15: #{bottleneck_forward.7} parent=11 // pred_region
        _
      $region16: #{bottleneck_forward.7} parent=11 // pred_fallthru
        _
      // Predicated region
      $region17: #{bottleneck_forward.7} parent=11 // pred_check
        %p121 = pneg %p77
      $region18: #{bottleneck_forward.7} parent=11 // pred_check_branch
        %123 = sbr.rel (%p121) target = $region20
      $region19: #{bottleneck_forward.7} parent=11 // pred_region
        _
      $region20: #{bottleneck_forward.7} parent=11 // pred_fallthru
        _
    $region12: #{bottleneck_forward.7} parent=5 // pred_fallthru
      _
    %p124 = scmp.lt.s32.totalorder %s9, 2
    // Predicated region
    $region21: #{bottleneck_forward.7} parent=5 // pred_check
      %p125 = pneg %p124
    $region22: #{bottleneck_forward.7} parent=5 // pred_check_branch
      %127 = sbr.rel (%p125) target = $region24
    $region23: #{bottleneck_forward.7} parent=5 // pred_region
      // Predicated region
      $region25: #{bottleneck_forward.7} parent=23 // pred_check
        %p128 = pneg %p29
      $region26: #{bottleneck_forward.7} parent=23 // pred_check_branch
        %130 = sbr.rel (%p128) target = $region28
      $region27: #{bottleneck_forward.7} parent=23 // pred_region
        %s131 = smul.u32 8, %s9
        %p132 = scmp.lt.s32.totalorder %s131, 15
        %s133 = scalar_select %p132, %s131, 15
        %s134 = smul.addr %s133, 8
        %s135 = scalar_lea.vmem %s0, %s134
        %s136 = smul.u32 8, %s9
      $region28: #{bottleneck_forward.7} parent=23 // pred_fallthru
        _
    $region24: #{bottleneck_forward.7} parent=5 // pred_fallthru
      _
    %p137 = scmp.le.s32.totalorder 1, %s9
    %p138 = scmp.lt.s32.totalorder %s9, 3
    %p139 = pnand %p137, %p138
    %p140 = pneg %p139
    // Predicated region
    $region29: #{bottleneck_forward.7} parent=5 // pred_check
      _
    $region30: #{bottleneck_forward.7} parent=5 // pred_check_branch
      %142 = sbr.rel (%p139) target = $region32
    $region31: #{bottleneck_forward.7} parent=5 // pred_region
      %s143 = ssub.s32 %s9, 1
      %s144 = smul.u32 8, %s14
      %p145 = scmp.lt.s32.totalorder %s144, 15
      %s146 = scalar_select %p145, %s144, 15
      %s147 = smul.addr %s146, 8
      %s148 = scalar_lea.vmem %s0, %s147
      %p149 = pneg %p35
      %p150 = pneg %p32
      %p151 = pneg %p56
      %p152 = pneg %p53
      %p153 = pneg %p77
      %p154 = pneg %p74
      %p155 = pneg %p103
      %p156 = pneg %p100
      %s157 = smul.u32 8, %s14
      %p158 = scmp.lt.s32.totalorder %s157, 15
      %s159 = scalar_select %p158, %s157, 15
      %s160 = smul.addr %s159, 8
      %s161 = scalar_lea.vmem %s3, %s160
      %s162 = smul.u32 8, %s14
      %p163 = scmp.lt.s32.totalorder %s162, 15
      %s164 = scalar_select %p163, %s162, 15
      %s165 = smul.addr %s164, 8
      %s166 = scalar_lea.vmem %s0, %s165
      %s167 = smul.u32 8, %s14
      %s168 = smul.u32 8, %s14
      %p169 = scmp.lt.s32.totalorder %s168, 15
      %s170 = scalar_select %p169, %s168, 15
      %s171 = smul.addr %s170, 8
      %s172 = scalar_lea.vmem %s3, %s171
      %s173 = smul.u32 8, %s14
      %v174 = vld [vmem:[%s166] sm:$0xff]
      %v175 = vld [vmem:[%s166 + $0x8] sm:$0xff]
      %v176 = vld [vmem:[%s166 + $0x10] sm:$0xff]
      %v177 = vld [vmem:[%s166 + $0x18] sm:$0xff]
      %v178 = vld [vmem:[%s166 + $0x20] sm:$0xff]
      %v179 = vld [vmem:[%s166 + $0x28] sm:$0xff]
      %v180 = vld [vmem:[%s166 + $0x30] sm:$0xff]
      %v181 = vld [vmem:[%s166 + $0x38] sm:$0xff]
      %v182 = vld [vmem:[%s1] sm:$0x1]
      %v184 = vperm.slane %v182, 0
      %v186 = vmul.f32 %v174, %v184
      %v187 = vmul.f32 %v175, %v184
      %v188 = vmul.f32 %v176, %v184
      %v189 = vmul.f32 %v177, %v184
      %v190 = vmul.f32 %v178, %v184
      %v191 = vmul.f32 %v179, %v184
      %v192 = vmul.f32 %v180, %v184
      %v193 = vmul.f32 %v181, %v184
      %v194 = vld [vmem:[%s2] sm:$0x1]
      %v196 = vperm.slane %v194, 0
      %v198 = vadd.f32 %v186, %v196
      %v199 = vadd.f32 %v187, %v196
      %v200 = vadd.f32 %v188, %v196
      %v201 = vadd.f32 %v189, %v196
      %v202 = vadd.f32 %v190, %v196
      %v203 = vadd.f32 %v191, %v196
      %v204 = vadd.f32 %v192, %v196
      %v205 = vadd.f32 %v193, %v196
      %v206 = vmax.f32 %v198, 0.0
      %v207 = vmax.f32 %v199, 0.0
      %v208 = vmax.f32 %v200, 0.0
      %v209 = vmax.f32 %v201, 0.0
      %v210 = vmax.f32 %v202, 0.0
      %v211 = vmax.f32 %v203, 0.0
      %v212 = vmax.f32 %v204, 0.0
      %v213 = vmax.f32 %v205, 0.0
      %214 = vst [vmem:[%s172] sm:$0xff] %v206
      %215 = vst [vmem:[%s172 + $0x8] sm:$0xff] %v207
      %216 = vst [vmem:[%s172 + $0x10] sm:$0xff] %v208
      %217 = vst [vmem:[%s172 + $0x18] sm:$0xff] %v209
      %218 = vst [vmem:[%s172 + $0x20] sm:$0xff] %v210
      %219 = vst [vmem:[%s172 + $0x28] sm:$0xff] %v211
      %220 = vst [vmem:[%s172 + $0x30] sm:$0xff] %v212
      %221 = vst [vmem:[%s172 + $0x38] sm:$0xff] %v213
      %s222 = smul.u32 8, %s14
      %p223 = scmp.lt.s32.totalorder %s222, 15
      %s224 = scalar_select %p223, %s222, 15
      %s225 = smul.addr %s224, 8
      %s226 = scalar_lea.vmem %s3, %s225
      // Predicated region
      $region33: #{bottleneck_forward.7} parent=31 // pred_check
        %p227 = pneg %p100
      $region34: #{bottleneck_forward.7} parent=31 // pred_check_branch
        %229 = sbr.rel (%p227) target = $region36
      $region35: #{bottleneck_forward.7} parent=31 // pred_region
        %s230 = smul.u32 8, %s14
      $region36: #{bottleneck_forward.7} parent=31 // pred_fallthru
        _
    $region32: #{bottleneck_forward.7} parent=5 // pred_fallthru
      _
    %p231 = scmp.le.s32.totalorder 2, %s9
    // Predicated region
    $region37: #{bottleneck_forward.7} parent=5 // pred_check
      %p232 = pneg %p231
    $region38: #{bottleneck_forward.7} parent=5 // pred_check_branch
      %234 = sbr.rel (%p232) target = $region40
    $region39: #{bottleneck_forward.7} parent=5 // pred_region
      %s235 = ssub.s32 %s9, 2
      // Predicated region
      $region41: #{bottleneck_forward.7} parent=39 // pred_check
        %p236 = pneg %p106
      $region42: #{bottleneck_forward.7} parent=39 // pred_check_branch
        %238 = sbr.rel (%p236) target = $region44
      $region43: #{bottleneck_forward.7} parent=39 // pred_region
        %s239 = smul.u32 8, %s15
        %p240 = scmp.lt.s32.totalorder %s239, 15
        %s241 = scalar_select %p240, %s239, 15
        %s242 = smul.addr %s241, 8
        %s243 = scalar_lea.vmem %s3, %s242
      $region44: #{bottleneck_forward.7} parent=39 // pred_fallthru
        _
    $region40: #{bottleneck_forward.7} parent=5 // pred_fallthru
      _
  $region6: #{bottleneck_forward.7} parent=0 // loop_footer
    %s13 = sadd.s32 1, %s9
  $region7: #{bottleneck_forward.7} parent=0 // loop_footer_branch
    %8 = sbr.rel target = $region3
  $region8: #{bottleneck_forward.7} parent=0 // loop_exit
    _

// kernel: bottleneck_forward.6
$region0: #{bottleneck_forward.6}
  #allocation0 [shape = 'u32[]', space=smem, size = 0x4, offset = 0x4, fixed_abs, tag = 'smem constant byte address 0x4 - core index']
  #allocation1 [shape = 'u32[72,128]{1,0:T(1,128)}', space=vmem, size = 0x9000, scoped, tag = 'internal scratch']
  %s0 = inlined_call_operand.vmem [shape: f32[128,128], index: 0, kind: input, shape index: {}]
  %s1 = inlined_call_operand.vmem [shape: f32[128,128], index: 1, kind: input, shape index: {}]
  %s2 = inlined_call_operand.vmem [shape: f32[128,128], index: 2, kind: output, shape index: {0}]
  %s3 = inlined_call_operand.vmem [shape: f32[2,2,128], index: 3, kind: output, shape index: {1}]
  %4 = xla_tuple %s2, %s3
  %s5 = sld [smem:[#allocation0]]
  $region49: #{bottleneck_forward.6} parent=0
    _
  %s7 = ssub.s32 1, %s5
  %s8 = scalar_select 0, %s7, %s5
  loop: start=0, step=1, limit=4
  $region2: #{bottleneck_forward.6} parent=0 // loop_pre_header
    _
  $region3: #{bottleneck_forward.6} parent=0 // loop_header
    %s10 = sphi 0, %s14
    %p11 = scmp.ge.s32.totalorder %s10, 4
    %s20 = sphi 0, %s22
    %s23 = sphi 0, %s20
    %s24 = sphi 0, %s23
    %s40 = sphi 0, %s24
    %s44 = sphi 0, %s44
    %s46 = sphi 0, %s44
    %s47 = sphi 0, %s46
    %s61 = sphi 0, %s47
    %s67 = sphi 0, %s69
    %s70 = sphi 0, %s67
    %s71 = sphi 0, %s70
    %s87 = sphi 0, %s71
    %s93 = sphi 0, %s95
    %s96 = sphi 0, %s93
    %s97 = sphi 0, %s96
    %s113 = sphi 0, %s97
  $region4: #{bottleneck_forward.6} parent=0 // loop_header_branch
    %13 = sbr.rel (%p11) target = $region8
  $region5: #{bottleneck_forward.6} parent=0 // loop_body
    %s15 = ssub.s32 %s10, 1
    %s16 = ssub.s32 %s10, 2
    %s17 = sadd.s32 %s10, 1
    %s18 = ssub.s32 %s10, %s17
    %p19 = scmp.eq.s32.totalorder %s18, 0
    %s21 = sadd.s32 %s20, 1
    %s22 = scalar_select %p19, %s20, %s21
    %p25 = pneg %p19
    %p26 = scmp.eq.s32.totalorder %s10, 1
    %p27 = por %p25, %p26
    %p28 = scmp.ne.s32.totalorder %s20, %s23
    %p29 = scmp.eq.s32.totalorder %s10, 0
    %p30 = por %p28, %p29
    %p31 = scmp.ne.s32.totalorder %s20, %s23
    %p32 = scmp.eq.s32.totalorder %s15, 1
    %p33 = por %p31, %p32
    %p34 = scmp.ne.s32.totalorder %s23, %s24
    %p35 = scmp.eq.s32.totalorder %s15, 0
    %p36 = por %p34, %p35
    %p37 = scmp.ne.s32.totalorder %s23, %s24
    %p38 = scmp.eq.s32.totalorder %s16, 1
    %p39 = por %p37, %p38
    %p41 = scmp.ne.s32.totalorder %s24, %s40
    %p42 = scmp.eq.s32.totalorder %s16, 0
    %p43 = por %p41, %p42
    %s45 = sadd.s32 %s44, 1
    %p48 = scmp.eq.s32.totalorder %s10, 1
    %p49 = scmp.ne.s32.totalorder %s44, %s46
    %p50 = scmp.eq.s32.totalorder %s10, 0
    %p51 = por %p49, %p50
    %p52 = scmp.ne.s32.totalorder %s44, %s46
    %p53 = scmp.eq.s32.totalorder %s15, 1
    %p54 = por %p52, %p53
    %p55 = scmp.ne.s32.totalorder %s46, %s47
    %p56 = scmp.eq.s32.totalorder %s15, 0
    %p57 = por %p55, %p56
    %p58 = scmp.ne.s32.totalorder %s46, %s47
    %p59 = scmp.eq.s32.totalorder %s16, 1
    %p60 = por %p58, %p59
    %p62 = scmp.ne.s32.totalorder %s47, %s61
    %p63 = scmp.eq.s32.totalorder %s16, 0
    %p64 = por %p62, %p63
    %s65 = ssub.s32 %s10, %s17
    %p66 = scmp.eq.s32.totalorder %s65, 0
    %s68 = sadd.s32 %s67, 1
    %s69 = scalar_select %p66, %s67, %s68
    %p72 = pneg %p66
    %p73 = scmp.eq.s32.totalorder %s10, 1
    %p74 = por %p72, %p73
    %p75 = scmp.ne.s32.totalorder %s67, %s70
    %p76 = scmp.eq.s32.totalorder %s10, 0
    %p77 = por %p75, %p76
    %p78 = scmp.ne.s32.totalorder %s67, %s70
    %p79 = scmp.eq.s32.totalorder %s15, 1
    %p80 = por %p78, %p79
    %p81 = scmp.ne.s32.totalorder %s70, %s71
    %p82 = scmp.eq.s32.totalorder %s15, 0
    %p83 = por %p81, %p82
    %p84 = scmp.ne.s32.totalorder %s70, %s71
    %p85 = scmp.eq.s32.totalorder %s16, 1
    %p86 = por %p84, %p85
    %p88 = scmp.ne.s32.totalorder %s71, %s87
    %p89 = scmp.eq.s32.totalorder %s16, 0
    %p90 = por %p88, %p89
    %s91 = ssub.s32 %s10, %s17
    %p92 = scmp.eq.s32.totalorder %s91, 0
    %s94 = sadd.s32 %s93, 1
    %s95 = scalar_select %p92, %s93, %s94
    %p98 = pneg %p92
    %p99 = scmp.eq.s32.totalorder %s10, 1
    %p100 = por %p98, %p99
    %p101 = scmp.ne.s32.totalorder %s93, %s96
    %p102 = scmp.eq.s32.totalorder %s10, 0
    %p103 = por %p101, %p102
    %p104 = scmp.ne.s32.totalorder %s93, %s96
    %p105 = scmp.eq.s32.totalorder %s15, 1
    %p106 = por %p104, %p105
    %p107 = scmp.ne.s32.totalorder %s96, %s97
    %p108 = scmp.eq.s32.totalorder %s15, 0
    %p109 = por %p107, %p108
    %p110 = scmp.ne.s32.totalorder %s96, %s97
    %p111 = scmp.eq.s32.totalorder %s16, 1
    %p112 = por %p110, %p111
    %p114 = scmp.ne.s32.totalorder %s97, %s113
    %p115 = scmp.eq.s32.totalorder %s16, 0
    %p116 = por %p114, %p115
    %p117 = scmp.le.s32.totalorder 1, %s10
    %p118 = scmp.lt.s32.totalorder %s10, 3
    %p119 = pnand %p117, %p118
    %p120 = pneg %p119
    // Predicated region
    $region9: #{bottleneck_forward.6} parent=5 // pred_check
      _
    $region10: #{bottleneck_forward.6} parent=5 // pred_check_branch
      %122 = sbr.rel (%p119) target = $region12
    $region11: #{bottleneck_forward.6} parent=5 // pred_region
      %s123 = ssub.s32 %s10, 1
      // Predicated region
      $region13: #{bottleneck_forward.6} parent=11 // pred_check
        %p124 = pneg %p57
      $region14: #{bottleneck_forward.6} parent=11 // pred_check_branch
        %126 = sbr.rel (%p124) target = $region16
      $region15: #{bottleneck_forward.6} parent=11 // pred_region
        _
      $region16: #{bottleneck_forward.6} parent=11 // pred_fallthru
        _
    $region12: #{bottleneck_forward.6} parent=5 // pred_fallthru
      _
    %p127 = scmp.lt.s32.totalorder %s10, 2
    // Predicated region
    $region17: #{bottleneck_forward.6} parent=5 // pred_check
      %p128 = pneg %p127
    $region18: #{bottleneck_forward.6} parent=5 // pred_check_branch
      %130 = sbr.rel (%p128) target = $region20
    $region19: #{bottleneck_forward.6} parent=5 // pred_region
      // Predicated region
      $region21: #{bottleneck_forward.6} parent=19 // pred_check
        %p131 = pneg %p30
      $region22: #{bottleneck_forward.6} parent=19 // pred_check_branch
        %133 = sbr.rel (%p131) target = $region24
      $region23: #{bottleneck_forward.6} parent=19 // pred_region
        %s134 = smul.u32 8, %s10
        %p135 = scmp.lt.s32.totalorder %s134, 15
        %s136 = scalar_select %p135, %s134, 15
        %s137 = smul.addr %s136, 8
        %s138 = scalar_lea.vmem %s0, %s137
        %s139 = smul.u32 8, %s10
      $region24: #{bottleneck_forward.6} parent=19 // pred_fallthru
        _
    $region20: #{bottleneck_forward.6} parent=5 // pred_fallthru
      _
    %p140 = scmp.le.s32.totalorder 1, %s10
    %p141 = scmp.lt.s32.totalorder %s10, 3
    %p142 = pnand %p140, %p141
    %p143 = pneg %p142
    // Predicated region
    $region25: #{bottleneck_forward.6} parent=5 // pred_check
      _
    $region26: #{bottleneck_forward.6} parent=5 // pred_check_branch
      %145 = sbr.rel (%p142) target = $region28
    $region27: #{bottleneck_forward.6} parent=5 // pred_region
      %s146 = ssub.s32 %s10, 1
      %s147 = smul.u32 8, %s15
      %p148 = scmp.lt.s32.totalorder %s147, 15
      %s149 = scalar_select %p148, %s147, 15
      %s150 = smul.addr %s149, 8
      %s151 = scalar_lea.vmem %s0, %s150
      %p152 = pneg %p36
      %p153 = pneg %p33
      %p154 = pneg %p57
      %p155 = pneg %p54
      %p156 = pneg %p83
      %p157 = pneg %p80
      %s158 = smul.u32 8, %s15
      %p159 = scmp.lt.s32.totalorder %s158, 15
      %s160 = scalar_select %p159, %s158, 15
      %s161 = smul.addr %s160, 8
      %s162 = scalar_lea.vmem %s2, %s161
      %p163 = pneg %p109
      %p164 = pneg %p106
      %p165 = scmp.lt.s32.totalorder %s15, 1
      %s166 = scalar_select %p165, %s15, 1
      %s167 = smul.addr %s166, 2
      %s168 = scalar_lea.vmem %s3, %s167
      %s169 = smul.u32 8, %s15
      %p170 = scmp.lt.s32.totalorder %s169, 15
      %s171 = scalar_select %p170, %s169, 15
      %s172 = smul.addr %s171, 8
      %s173 = scalar_lea.vmem %s0, %s172
      %s174 = smul.u32 8, %s15
      %s175 = smul.u32 8, %s15
      %p176 = scmp.lt.s32.totalorder %s175, 15
      %s177 = scalar_select %p176, %s175, 15
      %s178 = smul.addr %s177, 8
      %s179 = scalar_lea.vmem %s2, %s178
      %s180 = smul.u32 8, %s15
      %p181 = scmp.lt.s32.totalorder %s15, 1
      %s182 = scalar_select %p181, %s15, 1
      %s183 = smul.addr %s182, 2
      %s184 = scalar_lea.vmem %s3, %s183
      %v185 = vld [vmem:[%s173] sm:$0xff]
      %v186 = vld [vmem:[%s173 + $0x8] sm:$0xff]
      %v187 = vld [vmem:[%s173 + $0x10] sm:$0xff]
      %v188 = vld [vmem:[%s173 + $0x18] sm:$0xff]
      %v189 = vld [vmem:[%s173 + $0x20] sm:$0xff]
      %v190 = vld [vmem:[%s173 + $0x28] sm:$0xff]
      %v191 = vld [vmem:[%s173 + $0x30] sm:$0xff]
      %v192 = vld [vmem:[%s173 + $0x38] sm:$0xff]
      %v193 = vld [vmem:[%s1] sm:$0xff]
      %v194 = vld [vmem:[%s1 + $0x8] sm:$0xff]
      %v195 = vld [vmem:[%s1 + $0x10] sm:$0xff]
      %v196 = vld [vmem:[%s1 + $0x18] sm:$0xff]
      %v197 = vld [vmem:[%s1 + $0x20] sm:$0xff]
      %v198 = vld [vmem:[%s1 + $0x28] sm:$0xff]
      %v199 = vld [vmem:[%s1 + $0x30] sm:$0xff]
      %v200 = vld [vmem:[%s1 + $0x38] sm:$0xff]
      %v201 = vld [vmem:[%s1 + $0x40] sm:$0xff]
      %v202 = vld [vmem:[%s1 + $0x48] sm:$0xff]
      %v203 = vld [vmem:[%s1 + $0x50] sm:$0xff]
      %v204 = vld [vmem:[%s1 + $0x58] sm:$0xff]
      %v205 = vld [vmem:[%s1 + $0x60] sm:$0xff]
      %v206 = vld [vmem:[%s1 + $0x68] sm:$0xff]
      %v207 = vld [vmem:[%s1 + $0x70] sm:$0xff]
      %v208 = vld [vmem:[%s1 + $0x78] sm:$0xff]
      %209 = vmatpush.msra.mxu0 %v208
      %210 = vmatpush.msra.mxu0 %v207
      %211 = vmatpush.msra.mxu0 %v206
      %212 = vmatpush.msra.mxu0 %v205
      %213 = vmatpush.msra.mxu0 %v204
      %214 = vmatpush.msra.mxu0 %v203
      %215 = vmatpush.msra.mxu0 %v202
      %216 = vmatpush.msra.mxu0 %v201
      %217 = vmatpush.msra.mxu0 %v200
      %218 = vmatpush.msra.mxu0 %v199
      %219 = vmatpush.msra.mxu0 %v198
      %220 = vmatpush.msra.mxu0 %v197
      %221 = vmatpush.msra.mxu0 %v196
      %222 = vmatpush.msra.mxu0 %v195
      %223 = vmatpush.msra.mxu0 %v194
      %224 = vmatpush.msra.mxu0 %v193
      %225 = vmatmul.f32.gmra.mxu0 %v185
      %v226 = vpop.f32.mrf.mxu0
      %v227 = vadd.f32 0.0, %v226
      %228 = vmatmul.f32.gmra.mxu0 %v186
      %v229 = vpop.f32.mrf.mxu0
      %v230 = vadd.f32 0.0, %v229
      %231 = vmatmul.f32.gmra.mxu0 %v187
      %v232 = vpop.f32.mrf.mxu0
      %v233 = vadd.f32 0.0, %v232
      %234 = vmatmul.f32.gmra.mxu0 %v188
      %v235 = vpop.f32.mrf.mxu0
      %v236 = vadd.f32 0.0, %v235
      %237 = vmatmul.f32.gmra.mxu0 %v189
      %v238 = vpop.f32.mrf.mxu0
      %v239 = vadd.f32 0.0, %v238
      %240 = vmatmul.f32.gmra.mxu0 %v190
      %v241 = vpop.f32.mrf.mxu0
      %v242 = vadd.f32 0.0, %v241
      %243 = vmatmul.f32.gmra.mxu0 %v191
      %v244 = vpop.f32.mrf.mxu0
      %v245 = vadd.f32 0.0, %v244
      %246 = vmatmul.f32.gmra.mxu0 %v192
      %v247 = vpop.f32.mrf.mxu0
      %v248 = vadd.f32 0.0, %v247
      %249 = vdwg.mxu0
      %250 = vst [vmem:[%s179] sm:$0xff] %v227
      %251 = vst [vmem:[%s179 + $0x8] sm:$0xff] %v230
      %252 = vst [vmem:[%s179 + $0x10] sm:$0xff] %v233
      %253 = vst [vmem:[%s179 + $0x18] sm:$0xff] %v236
      %254 = vst [vmem:[%s179 + $0x20] sm:$0xff] %v239
      %255 = vst [vmem:[%s179 + $0x28] sm:$0xff] %v242
      %256 = vst [vmem:[%s179 + $0x30] sm:$0xff] %v245
      %257 = vst [vmem:[%s179 + $0x38] sm:$0xff] %v248
      %v258 = vadd.f32 %v227, %v230
      %v259 = vadd.f32 %v258, %v233
      %v260 = vadd.f32 %v259, %v236
      %v261 = vadd.f32 %v260, %v239
      %v262 = vadd.f32 %v261, %v242
      %v263 = vadd.f32 %v262, %v245
      %v264 = vadd.f32 %v263, %v248
      %v265 = vrot.slane %v264, 4
      %v266 = vadd.f32 %v264, %v265
      %v267 = vrot.slane %v266, 2
      %v268 = vadd.f32 %v266, %v267
      %v269 = vrot.slane %v268, 1
      %v270 = vadd.f32 %v268, %v269
      %271 = vst [vmem:[%s184] sm:$0x1] %v270
      %v272 = vmul.f32 %v227, %v227
      %v273 = vmul.f32 %v230, %v230
      %v274 = vmul.f32 %v233, %v233
      %v275 = vmul.f32 %v236, %v236
      %v276 = vmul.f32 %v239, %v239
      %v277 = vmul.f32 %v242, %v242
      %v278 = vmul.f32 %v245, %v245
      %v279 = vmul.f32 %v248, %v248
      %v280 = vadd.f32 %v272, %v273
      %v281 = vadd.f32 %v280, %v274
      %v282 = vadd.f32 %v281, %v275
      %v283 = vadd.f32 %v282, %v276
      %v284 = vadd.f32 %v283, %v277
      %v285 = vadd.f32 %v284, %v278
      %v286 = vadd.f32 %v285, %v279
      %v287 = vrot.slane %v286, 4
      %v288 = vadd.f32 %v286, %v287
      %v289 = vrot.slane %v288, 2
      %v290 = vadd.f32 %v288, %v289
      %v291 = vrot.slane %v290, 1
      %v292 = vadd.f32 %v290, %v291
      %293 = vst [vmem:[%s184 + $0x1] sm:$0x1] %v292
      %s294 = smul.u32 8, %s15
      %p295 = scmp.lt.s32.totalorder %s294, 15
      %s296 = scalar_select %p295, %s294, 15
      %s297 = smul.addr %s296, 8
      %s298 = scalar_lea.vmem %s2, %s297
      %p299 = scmp.lt.s32.totalorder %s15, 1
      %s300 = scalar_select %p299, %s15, 1
      %s301 = smul.addr %s300, 2
      %s302 = scalar_lea.vmem %s3, %s301
      // Predicated region
      $region29: #{bottleneck_forward.6} parent=27 // pred_check
        %p303 = pneg %p80
      $region30: #{bottleneck_forward.6} parent=27 // pred_check_branch
        %305 = sbr.rel (%p303) target = $region32
      $region31: #{bottleneck_forward.6} parent=27 // pred_region
        %s306 = smul.u32 8, %s15
      $region32: #{bottleneck_forward.6} parent=27 // pred_fallthru
        _
      // Predicated region
      $region33: #{bottleneck_forward.6} parent=27 // pred_check
        %p307 = pneg %p106
      $region34: #{bottleneck_forward.6} parent=27 // pred_check_branch
        %309 = sbr.rel (%p307) target = $region36
      $region35: #{bottleneck_forward.6} parent=27 // pred_region
        _
      $region36: #{bottleneck_forward.6} parent=27 // pred_fallthru
        _
    $region28: #{bottleneck_forward.6} parent=5 // pred_fallthru
      _
    %p310 = scmp.le.s32.totalorder 2, %s10
    // Predicated region
    $region37: #{bottleneck_forward.6} parent=5 // pred_check
      %p311 = pneg %p310
    $region38: #{bottleneck_forward.6} parent=5 // pred_check_branch
      %313 = sbr.rel (%p311) target = $region40
    $region39: #{bottleneck_forward.6} parent=5 // pred_region
      %s314 = ssub.s32 %s10, 2
      // Predicated region
      $region41: #{bottleneck_forward.6} parent=39 // pred_check
        %p315 = pneg %p86
      $region42: #{bottleneck_forward.6} parent=39 // pred_check_branch
        %317 = sbr.rel (%p315) target = $region44
      $region43: #{bottleneck_forward.6} parent=39 // pred_region
        %s318 = smul.u32 8, %s16
        %p319 = scmp.lt.s32.totalorder %s318, 15
        %s320 = scalar_select %p319, %s318, 15
        %s321 = smul.addr %s320, 8
        %s322 = scalar_lea.vmem %s2, %s321
      $region44: #{bottleneck_forward.6} parent=39 // pred_fallthru
        _
      // Predicated region
      $region45: #{bottleneck_forward.6} parent=39 // pred_check
        %p323 = pneg %p112
      $region46: #{bottleneck_forward.6} parent=39 // pred_check_branch
        %325 = sbr.rel (%p323) target = $region48
      $region47: #{bottleneck_forward.6} parent=39 // pred_region
        %p326 = scmp.lt.s32.totalorder %s16, 1
        %s327 = scalar_select %p326, %s16, 1
        %s328 = smul.addr %s327, 2
        %s329 = scalar_lea.vmem %s3, %s328
      $region48: #{bottleneck_forward.6} parent=39 // pred_fallthru
        _
    $region40: #{bottleneck_forward.6} parent=5 // pred_fallthru
      _
  $region6: #{bottleneck_forward.6} parent=0 // loop_footer
    %s14 = sadd.s32 1, %s10
  $region7: #{bottleneck_forward.6} parent=0 // loop_footer_branch
    %9 = sbr.rel target = $region3
  $region8: #{bottleneck_forward.6} parent=0 // loop_exit
    _

// kernel: bottleneck_forward.11
$region0: #{bottleneck_forward.11}
  #allocation0 [shape = 'u32[]', space=smem, size = 0x4, offset = 0x4, fixed_abs, tag = 'smem constant byte address 0x4 - core index']
  #allocation1 [shape = 'u32[72,128]{1,0:T(1,128)}', space=vmem, size = 0x9000, scoped, tag = 'internal scratch']
  %s0 = inlined_call_operand.vmem [shape: f32[128,128], index: 0, kind: input, shape index: {}]
  %s1 = inlined_call_operand.vmem [shape: f32[1,128], index: 1, kind: input, shape index: {}]
  %s2 = inlined_call_operand.vmem [shape: f32[1,128], index: 2, kind: input, shape index: {}]
  %s3 = inlined_call_operand.vmem [shape: f32[128,128], index: 3, kind: input, shape index: {}]
  %s4 = inlined_call_operand.hbm [shape: f32[128,128], index: 4, kind: output, shape index: {}]
  %s5 = sld [smem:[#allocation0]]
  $region49: #{bottleneck_forward.11} parent=0
    _
  %s7 = ssub.s32 1, %s5
  %s8 = scalar_select 0, %s7, %s5
  $region1: #{bottleneck_forward.11} parent=0
    #allocation2 [shape = 'u8[65536]{0}', space=vmem, size = 0x10000, scoped, tag = 'output window, operand 0']
    #allocation3 [shape = 's32[2]{0}', space=sflag, size = 0x8, scoped, tag = 'scoped memory for bottleneck_forward.11']
    %9 = vsyncpa [#allocation3], 0
    %s10 = scalar_lea.sflag [#allocation3], 1
    %11 = vsyncpa %s10, 0
    loop: start=0, step=1, limit=4
    $region2: #{bottleneck_forward.11} parent=1 // loop_pre_header
      _
    $region3: #{bottleneck_forward.11} parent=1 // loop_header
      %s13 = sphi 0, %s17
      %p14 = scmp.ge.s32.totalorder %s13, 4
      %s23 = sphi 0, %s25
      %s26 = sphi 0, %s23
      %s27 = sphi 0, %s26
      %s43 = sphi 0, %s27
      %s47 = sphi 0, %s47
      %s49 = sphi 0, %s47
      %s50 = sphi 0, %s49
      %s64 = sphi 0, %s50
      %s68 = sphi 0, %s68
      %s70 = sphi 0, %s68
      %s71 = sphi 0, %s70
      %s85 = sphi 0, %s71
      %s91 = sphi 0, %s93
      %s94 = sphi 0, %s91
      %s95 = sphi 0, %s94
      %s111 = sphi 0, %s95
      %s117 = sphi 0, %s119
      %s120 = sphi 0, %s117
      %s121 = sphi 0, %s120
      %s137 = sphi 0, %s121
    $region4: #{bottleneck_forward.11} parent=1 // loop_header_branch
      %16 = sbr.rel (%p14) target = $region8
    $region5: #{bottleneck_forward.11} parent=1 // loop_body
      %s18 = ssub.s32 %s13, 1
      %s19 = ssub.s32 %s13, 2
      %s20 = sadd.s32 %s13, 1
      %s21 = ssub.s32 %s13, %s20
      %p22 = scmp.eq.s32.totalorder %s21, 0
      %s24 = sadd.s32 %s23, 1
      %s25 = scalar_select %p22, %s23, %s24
      %p28 = pneg %p22
      %p29 = scmp.eq.s32.totalorder %s13, 1
      %p30 = por %p28, %p29
      %p31 = scmp.ne.s32.totalorder %s23, %s26
      %p32 = scmp.eq.s32.totalorder %s13, 0
      %p33 = por %p31, %p32
      %p34 = scmp.ne.s32.totalorder %s23, %s26
      %p35 = scmp.eq.s32.totalorder %s18, 1
      %p36 = por %p34, %p35
      %p37 = scmp.ne.s32.totalorder %s26, %s27
      %p38 = scmp.eq.s32.totalorder %s18, 0
      %p39 = por %p37, %p38
      %p40 = scmp.ne.s32.totalorder %s26, %s27
      %p41 = scmp.eq.s32.totalorder %s19, 1
      %p42 = por %p40, %p41
      %p44 = scmp.ne.s32.totalorder %s27, %s43
      %p45 = scmp.eq.s32.totalorder %s19, 0
      %p46 = por %p44, %p45
      %s48 = sadd.s32 %s47, 1
      %p51 = scmp.eq.s32.totalorder %s13, 1
      %p52 = scmp.ne.s32.totalorder %s47, %s49
      %p53 = scmp.eq.s32.totalorder %s13, 0
      %p54 = por %p52, %p53
      %p55 = scmp.ne.s32.totalorder %s47, %s49
      %p56 = scmp.eq.s32.totalorder %s18, 1
      %p57 = por %p55, %p56
      %p58 = scmp.ne.s32.totalorder %s49, %s50
      %p59 = scmp.eq.s32.totalorder %s18, 0
      %p60 = por %p58, %p59
      %p61 = scmp.ne.s32.totalorder %s49, %s50
      %p62 = scmp.eq.s32.totalorder %s19, 1
      %p63 = por %p61, %p62
      %p65 = scmp.ne.s32.totalorder %s50, %s64
      %p66 = scmp.eq.s32.totalorder %s19, 0
      %p67 = por %p65, %p66
      %s69 = sadd.s32 %s68, 1
      %p72 = scmp.eq.s32.totalorder %s13, 1
      %p73 = scmp.ne.s32.totalorder %s68, %s70
      %p74 = scmp.eq.s32.totalorder %s13, 0
      %p75 = por %p73, %p74
      %p76 = scmp.ne.s32.totalorder %s68, %s70
      %p77 = scmp.eq.s32.totalorder %s18, 1
      %p78 = por %p76, %p77
      %p79 = scmp.ne.s32.totalorder %s70, %s71
      %p80 = scmp.eq.s32.totalorder %s18, 0
      %p81 = por %p79, %p80
      %p82 = scmp.ne.s32.totalorder %s70, %s71
      %p83 = scmp.eq.s32.totalorder %s19, 1
      %p84 = por %p82, %p83
      %p86 = scmp.ne.s32.totalorder %s71, %s85
      %p87 = scmp.eq.s32.totalorder %s19, 0
      %p88 = por %p86, %p87
      %s89 = ssub.s32 %s13, %s20
      %p90 = scmp.eq.s32.totalorder %s89, 0
      %s92 = sadd.s32 %s91, 1
      %s93 = scalar_select %p90, %s91, %s92
      %p96 = pneg %p90
      %p97 = scmp.eq.s32.totalorder %s13, 1
      %p98 = por %p96, %p97
      %p99 = scmp.ne.s32.totalorder %s91, %s94
      %p100 = scmp.eq.s32.totalorder %s13, 0
      %p101 = por %p99, %p100
      %p102 = scmp.ne.s32.totalorder %s91, %s94
      %p103 = scmp.eq.s32.totalorder %s18, 1
      %p104 = por %p102, %p103
      %p105 = scmp.ne.s32.totalorder %s94, %s95
      %p106 = scmp.eq.s32.totalorder %s18, 0
      %p107 = por %p105, %p106
      %p108 = scmp.ne.s32.totalorder %s94, %s95
      %p109 = scmp.eq.s32.totalorder %s19, 1
      %p110 = por %p108, %p109
      %p112 = scmp.ne.s32.totalorder %s95, %s111
      %p113 = scmp.eq.s32.totalorder %s19, 0
      %p114 = por %p112, %p113
      %s115 = ssub.s32 %s13, %s20
      %p116 = scmp.eq.s32.totalorder %s115, 0
      %s118 = sadd.s32 %s117, 1
      %s119 = scalar_select %p116, %s117, %s118
      %p122 = pneg %p116
      %p123 = scmp.eq.s32.totalorder %s13, 1
      %p124 = por %p122, %p123
      %p125 = scmp.ne.s32.totalorder %s117, %s120
      %p126 = scmp.eq.s32.totalorder %s13, 0
      %p127 = por %p125, %p126
      %p128 = scmp.ne.s32.totalorder %s117, %s120
      %p129 = scmp.eq.s32.totalorder %s18, 1
      %p130 = por %p128, %p129
      %p131 = scmp.ne.s32.totalorder %s120, %s121
      %p132 = scmp.eq.s32.totalorder %s18, 0
      %p133 = por %p131, %p132
      %p134 = scmp.ne.s32.totalorder %s120, %s121
      %p135 = scmp.eq.s32.totalorder %s19, 1
      %p136 = por %p134, %p135
      %p138 = scmp.ne.s32.totalorder %s121, %s137
      %p139 = scmp.eq.s32.totalorder %s19, 0
      %p140 = por %p138, %p139
      %p141 = scmp.le.s32.totalorder 1, %s13
      %p142 = scmp.lt.s32.totalorder %s13, 3
      %p143 = pnand %p141, %p142
      %p144 = pneg %p143
      // Predicated region
      $region9: #{bottleneck_forward.11} parent=5 // pred_check
        _
      $region10: #{bottleneck_forward.11} parent=5 // pred_check_branch
        %146 = sbr.rel (%p143) target = $region12
      $region11: #{bottleneck_forward.11} parent=5 // pred_region
        %s147 = ssub.s32 %s13, 1
        // Predicated region
        $region13: #{bottleneck_forward.11} parent=11 // pred_check
          %p148 = pneg %p60
        $region14: #{bottleneck_forward.11} parent=11 // pred_check_branch
          %150 = sbr.rel (%p148) target = $region16
        $region15: #{bottleneck_forward.11} parent=11 // pred_region
          _
        $region16: #{bottleneck_forward.11} parent=11 // pred_fallthru
          _
        // Predicated region
        $region17: #{bottleneck_forward.11} parent=11 // pred_check
          %p151 = pneg %p81
        $region18: #{bottleneck_forward.11} parent=11 // pred_check_branch
          %153 = sbr.rel (%p151) target = $region20
        $region19: #{bottleneck_forward.11} parent=11 // pred_region
          _
        $region20: #{bottleneck_forward.11} parent=11 // pred_fallthru
          _
      $region12: #{bottleneck_forward.11} parent=5 // pred_fallthru
        _
      %p154 = scmp.lt.s32.totalorder %s13, 2
      // Predicated region
      $region21: #{bottleneck_forward.11} parent=5 // pred_check
        %p155 = pneg %p154
      $region22: #{bottleneck_forward.11} parent=5 // pred_check_branch
        %157 = sbr.rel (%p155) target = $region24
      $region23: #{bottleneck_forward.11} parent=5 // pred_region
        // Predicated region
        $region25: #{bottleneck_forward.11} parent=23 // pred_check
          %p158 = pneg %p33
        $region26: #{bottleneck_forward.11} parent=23 // pred_check_branch
          %160 = sbr.rel (%p158) target = $region28
        $region27: #{bottleneck_forward.11} parent=23 // pred_region
          %s161 = smul.u32 8, %s13
          %p162 = scmp.lt.s32.totalorder %s161, 15
          %s163 = scalar_select %p162, %s161, 15
          %s164 = smul.addr %s163, 8
          %s165 = scalar_lea.vmem %s0, %s164
          %s166 = smul.u32 8, %s13
        $region28: #{bottleneck_forward.11} parent=23 // pred_fallthru
          _
        // Predicated region
        $region29: #{bottleneck_forward.11} parent=23 // pred_check
          %p167 = pneg %p101
        $region30: #{bottleneck_forward.11} parent=23 // pred_check_branch
          %169 = sbr.rel (%p167) target = $region32
        $region31: #{bottleneck_forward.11} parent=23 // pred_region
          %s170 = smul.u32 8, %s13
          %p171 = scmp.lt.s32.totalorder %s170, 15
          %s172 = scalar_select %p171, %s170, 15
          %s173 = smul.addr %s172, 8
          %s174 = scalar_lea.vmem %s3, %s173
          %s175 = smul.u32 8, %s13
        $region32: #{bottleneck_forward.11} parent=23 // pred_fallthru
          _
      $region24: #{bottleneck_forward.11} parent=5 // pred_fallthru
        _
      %p176 = scmp.le.s32.totalorder 1, %s13
      %p177 = scmp.lt.s32.totalorder %s13, 3
      %p178 = pnand %p176, %p177
      %p179 = pneg %p178
      // Predicated region
      $region33: #{bottleneck_forward.11} parent=5 // pred_check
        _
      $region34: #{bottleneck_forward.11} parent=5 // pred_check_branch
        %181 = sbr.rel (%p178) target = $region36
      $region35: #{bottleneck_forward.11} parent=5 // pred_region
        %s182 = ssub.s32 %s13, 1
        %s183 = smul.u32 8, %s18
        %p184 = scmp.lt.s32.totalorder %s183, 15
        %s185 = scalar_select %p184, %s183, 15
        %s186 = smul.addr %s185, 8
        %s187 = scalar_lea.vmem %s0, %s186
        %p188 = pneg %p39
        %p189 = pneg %p36
        %p190 = pneg %p60
        %p191 = pneg %p57
        %p192 = pneg %p81
        %p193 = pneg %p78
        %s194 = smul.u32 8, %s18
        %p195 = scmp.lt.s32.totalorder %s194, 15
        %s196 = scalar_select %p195, %s194, 15
        %s197 = smul.addr %s196, 8
        %s198 = scalar_lea.vmem %s3, %s197
        %p199 = pneg %p107
        %p200 = pneg %p104
        %p201 = pneg %p133
        %p202 = pneg %p130
        %s203 = sand.u32 %s120, 1
        %s204 = scalar_lea.sflag [#allocation3], %s203
        %s205 = sand.u32 %s120, 1
        %s206 = smul.addr %s205, 64
        %s207 = scalar_lea.vmem [#allocation2], %s206
        %s208 = smul.u32 8, %s18
        %p209 = scmp.lt.s32.totalorder %s208, 15
        %s210 = scalar_select %p209, %s208, 15
        %s211 = smul.addr %s210, 8
        %s212 = scalar_lea.vmem %s0, %s211
        %s213 = smul.u32 8, %s18
        %s214 = smul.u32 8, %s18
        %p215 = scmp.lt.s32.totalorder %s214, 15
        %s216 = scalar_select %p215, %s214, 15
        %s217 = smul.addr %s216, 8
        %s218 = scalar_lea.vmem %s3, %s217
        %s219 = smul.u32 8, %s18
        %s220 = smul.u32 8, %s18
        %v221 = vld [vmem:[%s212] sm:$0xff]
        %v222 = vld [vmem:[%s212 + $0x8] sm:$0xff]
        %v223 = vld [vmem:[%s212 + $0x10] sm:$0xff]
        %v224 = vld [vmem:[%s212 + $0x18] sm:$0xff]
        %v225 = vld [vmem:[%s212 + $0x20] sm:$0xff]
        %v226 = vld [vmem:[%s212 + $0x28] sm:$0xff]
        %v227 = vld [vmem:[%s212 + $0x30] sm:$0xff]
        %v228 = vld [vmem:[%s212 + $0x38] sm:$0xff]
        %v229 = vld [vmem:[%s1] sm:$0x1]
        %v231 = vperm.slane %v229, 0
        %v233 = vmul.f32 %v221, %v231
        %v234 = vmul.f32 %v222, %v231
        %v235 = vmul.f32 %v223, %v231
        %v236 = vmul.f32 %v224, %v231
        %v237 = vmul.f32 %v225, %v231
        %v238 = vmul.f32 %v226, %v231
        %v239 = vmul.f32 %v227, %v231
        %v240 = vmul.f32 %v228, %v231
        %v241 = vld [vmem:[%s2] sm:$0x1]
        %v243 = vperm.slane %v241, 0
        %v245 = vadd.f32 %v233, %v243
        %v246 = vadd.f32 %v234, %v243
        %v247 = vadd.f32 %v235, %v243
        %v248 = vadd.f32 %v236, %v243
        %v249 = vadd.f32 %v237, %v243
        %v250 = vadd.f32 %v238, %v243
        %v251 = vadd.f32 %v239, %v243
        %v252 = vadd.f32 %v240, %v243
        %v253 = vld [vmem:[%s218] sm:$0xff]
        %v254 = vld [vmem:[%s218 + $0x8] sm:$0xff]
        %v255 = vld [vmem:[%s218 + $0x10] sm:$0xff]
        %v256 = vld [vmem:[%s218 + $0x18] sm:$0xff]
        %v257 = vld [vmem:[%s218 + $0x20] sm:$0xff]
        %v258 = vld [vmem:[%s218 + $0x28] sm:$0xff]
        %v259 = vld [vmem:[%s218 + $0x30] sm:$0xff]
        %v260 = vld [vmem:[%s218 + $0x38] sm:$0xff]
        %v261 = vadd.f32 %v245, %v253
        %v262 = vadd.f32 %v246, %v254
        %v263 = vadd.f32 %v247, %v255
        %v264 = vadd.f32 %v248, %v256
        %v265 = vadd.f32 %v249, %v257
        %v266 = vadd.f32 %v250, %v258
        %v267 = vadd.f32 %v251, %v259
        %v268 = vadd.f32 %v252, %v260
        %v269 = vmax.f32 %v261, 0.0
        %v270 = vmax.f32 %v262, 0.0
        %v271 = vmax.f32 %v263, 0.0
        %v272 = vmax.f32 %v264, 0.0
        %v273 = vmax.f32 %v265, 0.0
        %v274 = vmax.f32 %v266, 0.0
        %v275 = vmax.f32 %v267, 0.0
        %v276 = vmax.f32 %v268, 0.0
        %277 = vst [vmem:[%s207] sm:$0xff] %v269
        %278 = vst [vmem:[%s207 + $0x8] sm:$0xff] %v270
        %279 = vst [vmem:[%s207 + $0x10] sm:$0xff] %v271
        %280 = vst [vmem:[%s207 + $0x18] sm:$0xff] %v272
        %281 = vst [vmem:[%s207 + $0x20] sm:$0xff] %v273
        %282 = vst [vmem:[%s207 + $0x28] sm:$0xff] %v274
        %283 = vst [vmem:[%s207 + $0x30] sm:$0xff] %v275
        %284 = vst [vmem:[%s207 + $0x38] sm:$0xff] %v276
        %s285 = sand.u32 %s120, 1
        %s286 = scalar_lea.sflag [#allocation3], %s285
        %s287 = sand.u32 %s120, 1
        %s288 = smul.addr %s287, 64
        %s289 = scalar_lea.vmem [#allocation2], %s288
        // Predicated region
        $region37: #{bottleneck_forward.11} parent=35 // pred_check
          %p290 = pneg %p130
        $region38: #{bottleneck_forward.11} parent=35 // pred_check_branch
          %292 = sbr.rel (%p290) target = $region40
        $region39: #{bottleneck_forward.11} parent=35 // pred_region
          %s293 = smul.u32 8, %s18
          %295 = vsyncadd %s286, 0
          %s296 = smul.addr %s293, 8
          %s297 = scalar_lea.hbm %s4, %s296
          %s298 = sshll.u32 %s289, 4
          %s299 = int_to_ptr.vmem [resolvable:$true] %s298
          %s300 = sshll.u32 %s297, 4
          %s301 = int_to_ptr.hbm [resolvable:$true] %s300
          %306 = dma.vmem_to_hbm [thread:$0]  %s299, 1024, %s301, %s286, 128, 128, 8
        $region40: #{bottleneck_forward.11} parent=35 // pred_fallthru
          _
      $region36: #{bottleneck_forward.11} parent=5 // pred_fallthru
        _
      %p307 = scmp.le.s32.totalorder 2, %s13
      // Predicated region
      $region41: #{bottleneck_forward.11} parent=5 // pred_check
        %p308 = pneg %p307
      $region42: #{bottleneck_forward.11} parent=5 // pred_check_branch
        %310 = sbr.rel (%p308) target = $region44
      $region43: #{bottleneck_forward.11} parent=5 // pred_region
        %s311 = ssub.s32 %s13, 2
        // Predicated region
        $region45: #{bottleneck_forward.11} parent=43 // pred_check
          %p312 = pneg %p136
        $region46: #{bottleneck_forward.11} parent=43 // pred_check_branch
          %314 = sbr.rel (%p312) target = $region48
        $region47: #{bottleneck_forward.11} parent=43 // pred_region
          %s315 = sand.u32 %s121, 1
          %s316 = scalar_lea.sflag [#allocation3], %s315
          %s317 = sand.u32 %s121, 1
          %s318 = smul.addr %s317, 64
          %s319 = scalar_lea.vmem [#allocation2], %s318
          %321 = dma.done %s316, 1024
        $region48: #{bottleneck_forward.11} parent=43 // pred_fallthru
          _
      $region44: #{bottleneck_forward.11} parent=5 // pred_fallthru
        _
    $region6: #{bottleneck_forward.11} parent=1 // loop_footer
      %s17 = sadd.s32 1, %s13
    $region7: #{bottleneck_forward.11} parent=1 // loop_footer_branch
      %12 = sbr.rel target = $region3
    $region8: #{bottleneck_forward.11} parent=1 // loop_exit
      _
    %322 = vsyncpa [#allocation3], 1
    %s323 = scalar_lea.sflag [#allocation3], 1
    %324 = vsyncpa %s323, 1

// kernel: bottleneck_forward.8
$region0: #{bottleneck_forward.8}
  #allocation0 [shape = 'u32[]', space=smem, size = 0x4, offset = 0x4, fixed_abs, tag = 'smem constant byte address 0x4 - core index']
  #allocation1 [shape = 'u32[72,128]{1,0:T(1,128)}', space=vmem, size = 0x9000, scoped, tag = 'internal scratch']
  %s0 = inlined_call_operand.vmem [shape: f32[2,10,10,128], index: 0, kind: input, shape index: {}]
  %s1 = inlined_call_operand.hbm [shape: f32[9,128,128], index: 1, kind: input, shape index: {}]
  %s2 = inlined_call_operand.vmem [shape: f32[2,64,128], index: 2, kind: output, shape index: {0}]
  %s3 = inlined_call_operand.vmem [shape: f32[2,2,2,128], index: 3, kind: output, shape index: {1}]
  %4 = xla_tuple %s2, %s3
  %s5 = sld [smem:[#allocation0]]
  $region53: #{bottleneck_forward.8} parent=0
    _
  %s7 = ssub.s32 1, %s5
  %s8 = scalar_select 0, %s7, %s5
  $region1: #{bottleneck_forward.8} parent=0
    #allocation2 [shape = 'u8[589824]{0}', space=vmem, size = 0x90000, scoped, tag = 'input window, operand 1, single buffered']
    #allocation3 [shape = 's32[2]{0}', space=sflag, size = 0x8, scoped, tag = 'scoped memory for bottleneck_forward.8']
    %9 = vsyncpa [#allocation3], 0
    loop: start=0, step=1, limit=6
    $region2: #{bottleneck_forward.8} parent=1 // loop_pre_header
      _
    $region3: #{bottleneck_forward.8} parent=1 // loop_header
      %s11 = sphi 0, %s15
      %p12 = scmp.ge.s32.totalorder %s11, 6
      %s18 = sphi 0, %s30
      %s19 = sphi 0, %s26
      %s20 = sphi 0, %s18
      %s21 = sphi 0, %s19
      %s22 = sphi 0, %s20
      %s23 = sphi 0, %s21
      %s33 = sphi 0, %s35
      %s36 = sphi 0, %s33
      %s37 = sphi 0, %s36
      %s53 = sphi 0, %s37
      %s57 = sphi 0, %s57
      %s59 = sphi 0, %s57
      %s60 = sphi 0, %s59
      %s74 = sphi 0, %s60
      %s82 = sphi 0, %s84
      %s85 = sphi 0, %s82
      %s86 = sphi 0, %s85
      %s102 = sphi 0, %s86
      %s110 = sphi 0, %s112
      %s113 = sphi 0, %s110
      %s114 = sphi 0, %s113
      %s130 = sphi 0, %s114
    $region4: #{bottleneck_forward.8} parent=1 // loop_header_branch
      %14 = sbr.rel (%p12) target = $region8
    $region5: #{bottleneck_forward.8} parent=1 // loop_body
      %s16 = ssub.s32 %s11, 1
      %s17 = ssub.s32 %s11, 2
      %s24 = sadd.s32 1, %s19
      %p25 = scmp.ge.s32.totalorder %s24, 2
      %s26 = scalar_select %p25, 0, %s24
      %s27 = sadd.s32 1, %s18
      %s28 = scalar_select %p25, %s27, %s18
      %p29 = scmp.ge.s32.totalorder %s28, 2
      %s30 = scalar_select %p29, 0, %s28
      %s31 = ssub.s32 %s18, %s30
      %p32 = scmp.eq.s32.totalorder %s31, 0
      %s34 = sadd.s32 %s33, 1
      %s35 = scalar_select %p32, %s33, %s34
      %p38 = pneg %p32
      %p39 = scmp.eq.s32.totalorder %s11, 3
      %p40 = por %p38, %p39
      %p41 = scmp.ne.s32.totalorder %s33, %s36
      %p42 = scmp.eq.s32.totalorder %s11, 0
      %p43 = por %p41, %p42
      %p44 = scmp.ne.s32.totalorder %s33, %s36
      %p45 = scmp.eq.s32.totalorder %s16, 3
      %p46 = por %p44, %p45
      %p47 = scmp.ne.s32.totalorder %s36, %s37
      %p48 = scmp.eq.s32.totalorder %s16, 0
      %p49 = por %p47, %p48
      %p50 = scmp.ne.s32.totalorder %s36, %s37
      %p51 = scmp.eq.s32.totalorder %s17, 3
      %p52 = por %p50, %p51
      %p54 = scmp.ne.s32.totalorder %s37, %s53
      %p55 = scmp.eq.s32.totalorder %s17, 0
      %p56 = por %p54, %p55
      %s58 = sadd.s32 %s57, 1
      %p61 = scmp.eq.s32.totalorder %s11, 3
      %p62 = scmp.ne.s32.totalorder %s57, %s59
      %p63 = scmp.eq.s32.totalorder %s11, 0
      %p64 = por %p62, %p63
      %p65 = scmp.ne.s32.totalorder %s57, %s59
      %p66 = scmp.eq.s32.totalorder %s16, 3
      %p67 = por %p65, %p66
      %p68 = scmp.ne.s32.totalorder %s59, %s60
      %p69 = scmp.eq.s32.totalorder %s16, 0
      %p70 = por %p68, %p69
      %p71 = scmp.ne.s32.totalorder %s59, %s60
      %p72 = scmp.eq.s32.totalorder %s17, 3
      %p73 = por %p71, %p72
      %p75 = scmp.ne.s32.totalorder %s60, %s74
      %p76 = scmp.eq.s32.totalorder %s17, 0
      %p77 = por %p75, %p76
      %s78 = ssub.s32 %s18, %s30
      %s79 = ssub.s32 %s19, %s26
      %s80 = sor.u32 %s78, %s79
      %p81 = scmp.eq.s32.totalorder %s80, 0
      %s83 = sadd.s32 %s82, 1
      %s84 = scalar_select %p81, %s82, %s83
      %p87 = pneg %p81
      %p88 = scmp.eq.s32.totalorder %s11, 3
      %p89 = por %p87, %p88
      %p90 = scmp.ne.s32.totalorder %s82, %s85
      %p91 = scmp.eq.s32.totalorder %s11, 0
      %p92 = por %p90, %p91
      %p93 = scmp.ne.s32.totalorder %s82, %s85
      %p94 = scmp.eq.s32.totalorder %s16, 3
      %p95 = por %p93, %p94
      %p96 = scmp.ne.s32.totalorder %s85, %s86
      %p97 = scmp.eq.s32.totalorder %s16, 0
      %p98 = por %p96, %p97
      %p99 = scmp.ne.s32.totalorder %s85, %s86
      %p100 = scmp.eq.s32.totalorder %s17, 3
      %p101 = por %p99, %p100
      %p103 = scmp.ne.s32.totalorder %s86, %s102
      %p104 = scmp.eq.s32.totalorder %s17, 0
      %p105 = por %p103, %p104
      %s106 = ssub.s32 %s18, %s30
      %s107 = ssub.s32 %s19, %s26
      %s108 = sor.u32 %s106, %s107
      %p109 = scmp.eq.s32.totalorder %s108, 0
      %s111 = sadd.s32 %s110, 1
      %s112 = scalar_select %p109, %s110, %s111
      %p115 = pneg %p109
      %p116 = scmp.eq.s32.totalorder %s11, 3
      %p117 = por %p115, %p116
      %p118 = scmp.ne.s32.totalorder %s110, %s113
      %p119 = scmp.eq.s32.totalorder %s11, 0
      %p120 = por %p118, %p119
      %p121 = scmp.ne.s32.totalorder %s110, %s113
      %p122 = scmp.eq.s32.totalorder %s16, 3
      %p123 = por %p121, %p122
      %p124 = scmp.ne.s32.totalorder %s113, %s114
      %p125 = scmp.eq.s32.totalorder %s16, 0
      %p126 = por %p124, %p125
      %p127 = scmp.ne.s32.totalorder %s113, %s114
      %p128 = scmp.eq.s32.totalorder %s17, 3
      %p129 = por %p127, %p128
      %p131 = scmp.ne.s32.totalorder %s114, %s130
      %p132 = scmp.eq.s32.totalorder %s17, 0
      %p133 = por %p131, %p132
      %p134 = scmp.le.s32.totalorder 1, %s11
      %p135 = scmp.lt.s32.totalorder %s11, 5
      %p136 = pnand %p134, %p135
      %p137 = pneg %p136
      // Predicated region
      $region9: #{bottleneck_forward.8} parent=5 // pred_check
        _
      $region10: #{bottleneck_forward.8} parent=5 // pred_check_branch
        %139 = sbr.rel (%p136) target = $region12
      $region11: #{bottleneck_forward.8} parent=5 // pred_region
        %s140 = ssub.s32 %s11, 1
        // Predicated region
        $region13: #{bottleneck_forward.8} parent=11 // pred_check
          %p141 = pneg %p70
        $region14: #{bottleneck_forward.8} parent=11 // pred_check_branch
          %143 = sbr.rel (%p141) target = $region16
        $region15: #{bottleneck_forward.8} parent=11 // pred_region
          %145 = vsyncadd [#allocation3], 0
          %s146 = sshll.u32 %s1, 4
          %s147 = int_to_ptr.hbm [resolvable:$true] %s146
          %s148 = sshll.u32 [#allocation2], 4
          %s149 = int_to_ptr.vmem [resolvable:$true] %s148
          %154 = dma.hbm_to_vmem [thread:$0]  %s147, 18432, %s149, [#allocation3], 128, 128, 8
        $region16: #{bottleneck_forward.8} parent=11 // pred_fallthru
          _
      $region12: #{bottleneck_forward.8} parent=5 // pred_fallthru
        _
      %p155 = scmp.lt.s32.totalorder %s11, 4
      // Predicated region
      $region17: #{bottleneck_forward.8} parent=5 // pred_check
        %p156 = pneg %p155
      $region18: #{bottleneck_forward.8} parent=5 // pred_check_branch
        %158 = sbr.rel (%p156) target = $region20
      $region19: #{bottleneck_forward.8} parent=5 // pred_region
        // Predicated region
        $region21: #{bottleneck_forward.8} parent=19 // pred_check
          %p159 = pneg %p43
        $region22: #{bottleneck_forward.8} parent=19 // pred_check_branch
          %161 = sbr.rel (%p159) target = $region24
        $region23: #{bottleneck_forward.8} parent=19 // pred_region
          %p162 = scmp.lt.s32.totalorder %s18, 1
          %s163 = scalar_select %p162, %s18, 1
          %s164 = smul.addr %s163, 20
          %s165 = smul.addr %s164, 8
          %s166 = scalar_lea.vmem %s0, %s165
        $region24: #{bottleneck_forward.8} parent=19 // pred_fallthru
          _
      $region20: #{bottleneck_forward.8} parent=5 // pred_fallthru
        _
      %p167 = scmp.le.s32.totalorder 1, %s11
      %p168 = scmp.lt.s32.totalorder %s11, 5
      %p169 = pnand %p167, %p168
      %p170 = pneg %p169
      // Predicated region
      $region25: #{bottleneck_forward.8} parent=5 // pred_check
        _
      $region26: #{bottleneck_forward.8} parent=5 // pred_check_branch
        %172 = sbr.rel (%p169) target = $region28
      $region27: #{bottleneck_forward.8} parent=5 // pred_region
        %s173 = ssub.s32 %s11, 1
        // Predicated region
        $region29: #{bottleneck_forward.8} parent=27 // pred_check
          %p174 = pneg %p70
        $region30: #{bottleneck_forward.8} parent=27 // pred_check_branch
          %176 = sbr.rel (%p174) target = $region32
        $region31: #{bottleneck_forward.8} parent=27 // pred_region
          %178 = dma.done [#allocation3], 18432
        $region32: #{bottleneck_forward.8} parent=27 // pred_fallthru
          _
        %p179 = scmp.lt.s32.totalorder %s20, 1
        %s180 = scalar_select %p179, %s20, 1
        %s181 = smul.addr %s180, 20
        %s182 = smul.addr %s181, 8
        %s183 = scalar_lea.vmem %s0, %s182
        %p184 = pneg %p49
        %p185 = pneg %p46
        %p186 = pneg %p70
        %p187 = pneg %p67
        %p188 = pneg %p98
        %p189 = pneg %p95
        %s190 = smul.u32 4, %s21
        %p191 = scmp.lt.s32.totalorder %s20, 1
        %s192 = scalar_select %p191, %s20, 1
        %p193 = scmp.lt.s32.totalorder %s190, 7
        %s194 = scalar_select %p193, %s190, 7
        %s195 = smul.addr %s192, 8
        %s196 = sadd.s32 %s194, %s195
        %s197 = smul.addr %s196, 8
        %s198 = scalar_lea.vmem %s2, %s197
        %p199 = pneg %p126
        %p200 = pneg %p123
        %p201 = scmp.lt.s32.totalorder %s20, 1
        %s202 = scalar_select %p201, %s20, 1
        %p203 = scmp.lt.s32.totalorder %s21, 1
        %s204 = scalar_select %p203, %s21, 1
        %s205 = smul.addr %s202, 2
        %s206 = sadd.s32 %s204, %s205
        %s207 = smul.addr %s206, 2
        %s208 = scalar_lea.vmem %s3, %s207
        %p209 = scmp.lt.s32.totalorder %s20, 1
        %s210 = scalar_select %p209, %s20, 1
        %s211 = smul.addr %s210, 20
        %s212 = smul.addr %s211, 8
        %s213 = scalar_lea.vmem %s0, %s212
        %s214 = smul.u32 4, %s21
        %p215 = scmp.lt.s32.totalorder %s20, 1
        %s216 = scalar_select %p215, %s20, 1
        %p217 = scmp.lt.s32.totalorder %s214, 7
        %s218 = scalar_select %p217, %s214, 7
        %s219 = smul.addr %s216, 8
        %s220 = sadd.s32 %s218, %s219
        %s221 = smul.addr %s220, 8
        %s222 = scalar_lea.vmem %s2, %s221
        %s223 = smul.u32 4, %s21
        %p224 = scmp.lt.s32.totalorder %s20, 1
        %s225 = scalar_select %p224, %s20, 1
        %p226 = scmp.lt.s32.totalorder %s21, 1
        %s227 = scalar_select %p226, %s21, 1
        %s228 = smul.addr %s225, 2
        %s229 = sadd.s32 %s227, %s228
        %s230 = smul.addr %s229, 2
        %s231 = scalar_lea.vmem %s3, %s230
        %s232 = smul.u32 %s21, 4
        %s233 = smul.u32 %s232, 16
        %s234 = scalar_lea.vmem %s213, %s233
        %v235 = vld [vmem:[%s234] sm:$0xff]
        %v236 = vld [vmem:[%s234 + $0x10] sm:$0xff]
        %v237 = vld [vmem:[%s234 + $0x20] sm:$0xff]
        %v238 = vld [vmem:[%s234 + $0x30] sm:$0xff]
        %v239 = vld [vmem:[#allocation2] sm:$0xff]
        %v240 = vld [vmem:[#allocation2 + $0x8] sm:$0xff]
        %v241 = vld [vmem:[#allocation2 + $0x10] sm:$0xff]
        %v242 = vld [vmem:[#allocation2 + $0x18] sm:$0xff]
        %v243 = vld [vmem:[#allocation2 + $0x20] sm:$0xff]
        %v244 = vld [vmem:[#allocation2 + $0x28] sm:$0xff]
        %v245 = vld [vmem:[#allocation2 + $0x30] sm:$0xff]
        %v246 = vld [vmem:[#allocation2 + $0x38] sm:$0xff]
        %v247 = vld [vmem:[#allocation2 + $0x40] sm:$0xff]
        %v248 = vld [vmem:[#allocation2 + $0x48] sm:$0xff]
        %v249 = vld [vmem:[#allocation2 + $0x50] sm:$0xff]
        %v250 = vld [vmem:[#allocation2 + $0x58] sm:$0xff]
        %v251 = vld [vmem:[#allocation2 + $0x60] sm:$0xff]
        %v252 = vld [vmem:[#allocation2 + $0x68] sm:$0xff]
        %v253 = vld [vmem:[#allocation2 + $0x70] sm:$0xff]
        %v254 = vld [vmem:[#allocation2 + $0x78] sm:$0xff]
        %v255 = vld [vmem:[%s234 + $0x1] sm:$0xff]
        %v256 = vld [vmem:[%s234 + $0x11] sm:$0xff]
        %v257 = vld [vmem:[%s234 + $0x21] sm:$0xff]
        %v258 = vld [vmem:[%s234 + $0x31] sm:$0xff]
        %s259 = scalar_lea.vmem [#allocation2], 128
        %v260 = vld [vmem:[%s259] sm:$0xff]
        %v261 = vld [vmem:[%s259 + $0x8] sm:$0xff]
        %v262 = vld [vmem:[%s259 + $0x10] sm:$0xff]
        %v263 = vld [vmem:[%s259 + $0x18] sm:$0xff]
        %v264 = vld [vmem:[%s259 + $0x20] sm:$0xff]
        %v265 = vld [vmem:[%s259 + $0x28] sm:$0xff]
        %v266 = vld [vmem:[%s259 + $0x30] sm:$0xff]
        %v267 = vld [vmem:[%s259 + $0x38] sm:$0xff]
        %v268 = vld [vmem:[%s259 + $0x40] sm:$0xff]
        %v269 = vld [vmem:[%s259 + $0x48] sm:$0xff]
        %v270 = vld [vmem:[%s259 + $0x50] sm:$0xff]
        %v271 = vld [vmem:[%s259 + $0x58] sm:$0xff]
        %v272 = vld [vmem:[%s259 + $0x60] sm:$0xff]
        %v273 = vld [vmem:[%s259 + $0x68] sm:$0xff]
        %v274 = vld [vmem:[%s259 + $0x70] sm:$0xff]
        %v275 = vld [vmem:[%s259 + $0x78] sm:$0xff]
        %276 = vmatpush.msra.mxu0 %v275
        %277 = vmatpush.msra.mxu0 %v274
        %278 = vmatpush.msra.mxu0 %v273
        %279 = vmatpush.msra.mxu0 %v272
        %280 = vmatpush.msra.mxu0 %v271
        %281 = vmatpush.msra.mxu0 %v270
        %282 = vmatpush.msra.mxu0 %v269
        %283 = vmatpush.msra.mxu0 %v268
        %284 = vmatpush.msra.mxu0 %v267
        %285 = vmatpush.msra.mxu0 %v266
        %286 = vmatpush.msra.mxu0 %v265
        %287 = vmatpush.msra.mxu0 %v264
        %288 = vmatpush.msra.mxu0 %v263
        %289 = vmatpush.msra.mxu0 %v262
        %290 = vmatpush.msra.mxu0 %v261
        %291 = vmatpush.msra.mxu0 %v260
        %292 = vmatmul.f32.gmra.mxu0 %v255
        %v293 = vpop.f32.mrf.mxu0
        %v294 = vadd.f32 0.0, %v293
        %295 = vmatmul.f32.gmra.mxu0 %v256
        %v296 = vpop.f32.mrf.mxu0
        %v297 = vadd.f32 0.0, %v296
        %298 = vmatmul.f32.gmra.mxu0 %v257
        %v299 = vpop.f32.mrf.mxu0
        %v300 = vadd.f32 0.0, %v299
        %301 = vmatmul.f32.gmra.mxu0 %v258
        %v302 = vpop.f32.mrf.mxu0
        %v303 = vadd.f32 0.0, %v302
        %304 = vdwg.mxu0
        %305 = vmatpush.msra.mxu0 %v254
        %306 = vmatpush.msra.mxu0 %v253
        %307 = vmatpush.msra.mxu0 %v252
        %308 = vmatpush.msra.mxu0 %v251
        %309 = vmatpush.msra.mxu0 %v250
        %310 = vmatpush.msra.mxu0 %v249
        %311 = vmatpush.msra.mxu0 %v248
        %312 = vmatpush.msra.mxu0 %v247
        %313 = vmatpush.msra.mxu0 %v246
        %314 = vmatpush.msra.mxu0 %v245
        %315 = vmatpush.msra.mxu0 %v244
        %316 = vmatpush.msra.mxu0 %v243
        %317 = vmatpush.msra.mxu0 %v242
        %318 = vmatpush.msra.mxu0 %v241
        %319 = vmatpush.msra.mxu0 %v240
        %320 = vmatpush.msra.mxu0 %v239
        %321 = vmatmul.f32.gmra.mxu0 %v235
        %v322 = vpop.f32.mrf.mxu0
        %v323 = vadd.f32 %v294, %v322
        %324 = vmatmul.f32.gmra.mxu0 %v236
        %v325 = vpop.f32.mrf.mxu0
        %v326 = vadd.f32 %v297, %v325
        %327 = vmatmul.f32.gmra.mxu0 %v237
        %v328 = vpop.f32.mrf.mxu0
        %v329 = vadd.f32 %v300, %v328
        %330 = vmatmul.f32.gmra.mxu0 %v238
        %v331 = vpop.f32.mrf.mxu0
        %v332 = vadd.f32 %v303, %v331
        %333 = vdwg.mxu0
        %v334 = vld [vmem:[%s234 + $0x2] sm:$0xff]
        %v335 = vld [vmem:[%s234 + $0x12] sm:$0xff]
        %v336 = vld [vmem:[%s234 + $0x22] sm:$0xff]
        %v337 = vld [vmem:[%s234 + $0x32] sm:$0xff]
        %s338 = scalar_lea.vmem [#allocation2], 256
        %v339 = vld [vmem:[%s338] sm:$0xff]
        %v340 = vld [vmem:[%s338 + $0x8] sm:$0xff]
        %v341 = vld [vmem:[%s338 + $0x10] sm:$0xff]
        %v342 = vld [vmem:[%s338 + $0x18] sm:$0xff]
        %v343 = vld [vmem:[%s338 + $0x20] sm:$0xff]
        %v344 = vld [vmem:[%s338 + $0x28] sm:$0xff]
        %v345 = vld [vmem:[%s338 + $0x30] sm:$0xff]
        %v346 = vld [vmem:[%s338 + $0x38] sm:$0xff]
        %v347 = vld [vmem:[%s338 + $0x40] sm:$0xff]
        %v348 = vld [vmem:[%s338 + $0x48] sm:$0xff]
        %v349 = vld [vmem:[%s338 + $0x50] sm:$0xff]
        %v350 = vld [vmem:[%s338 + $0x58] sm:$0xff]
        %v351 = vld [vmem:[%s338 + $0x60] sm:$0xff]
        %v352 = vld [vmem:[%s338 + $0x68] sm:$0xff]
        %v353 = vld [vmem:[%s338 + $0x70] sm:$0xff]
        %v354 = vld [vmem:[%s338 + $0x78] sm:$0xff]
        %355 = vmatpush.msra.mxu0 %v354
        %356 = vmatpush.msra.mxu0 %v353
        %357 = vmatpush.msra.mxu0 %v352
        %358 = vmatpush.msra.mxu0 %v351
        %359 = vmatpush.msra.mxu0 %v350
        %360 = vmatpush.msra.mxu0 %v349
        %361 = vmatpush.msra.mxu0 %v348
        %362 = vmatpush.msra.mxu0 %v347
        %363 = vmatpush.msra.mxu0 %v346
        %364 = vmatpush.msra.mxu0 %v345
        %365 = vmatpush.msra.mxu0 %v344
        %366 = vmatpush.msra.mxu0 %v343
        %367 = vmatpush.msra.mxu0 %v342
        %368 = vmatpush.msra.mxu0 %v341
        %369 = vmatpush.msra.mxu0 %v340
        %370 = vmatpush.msra.mxu0 %v339
        %371 = vmatmul.f32.gmra.mxu0 %v334
        %v372 = vpop.f32.mrf.mxu0
        %v373 = vadd.f32 0.0, %v372
        %374 = vmatmul.f32.gmra.mxu0 %v335
        %v375 = vpop.f32.mrf.mxu0
        %v376 = vadd.f32 0.0, %v375
        %377 = vmatmul.f32.gmra.mxu0 %v336
        %v378 = vpop.f32.mrf.mxu0
        %v379 = vadd.f32 0.0, %v378
        %380 = vmatmul.f32.gmra.mxu0 %v337
        %v381 = vpop.f32.mrf.mxu0
        %v382 = vadd.f32 0.0, %v381
        %383 = vdwg.mxu0
        %v384 = vadd.f32 %v323, %v373
        %v385 = vadd.f32 %v326, %v376
        %v386 = vadd.f32 %v329, %v379
        %v387 = vadd.f32 %v332, %v382
        %s388 = sadd.s32 %s232, 1
        %s389 = smul.u32 %s388, 16
        %s390 = scalar_lea.vmem %s213, %s389
        %v391 = vld [vmem:[%s390] sm:$0xff]
        %v392 = vld [vmem:[%s390 + $0x10] sm:$0xff]
        %v393 = vld [vmem:[%s390 + $0x20] sm:$0xff]
        %v394 = vld [vmem:[%s390 + $0x30] sm:$0xff]
        %s395 = scalar_lea.vmem [#allocation2], 384
        %v396 = vld [vmem:[%s395] sm:$0xff]
        %v397 = vld [vmem:[%s395 + $0x8] sm:$0xff]
        %v398 = vld [vmem:[%s395 + $0x10] sm:$0xff]
        %v399 = vld [vmem:[%s395 + $0x18] sm:$0xff]
        %v400 = vld [vmem:[%s395 + $0x20] sm:$0xff]
        %v401 = vld [vmem:[%s395 + $0x28] sm:$0xff]
        %v402 = vld [vmem:[%s395 + $0x30] sm:$0xff]
        %v403 = vld [vmem:[%s395 + $0x38] sm:$0xff]
        %v404 = vld [vmem:[%s395 + $0x40] sm:$0xff]
        %v405 = vld [vmem:[%s395 + $0x48] sm:$0xff]
        %v406 = vld [vmem:[%s395 + $0x50] sm:$0xff]
        %v407 = vld [vmem:[%s395 + $0x58] sm:$0xff]
        %v408 = vld [vmem:[%s395 + $0x60] sm:$0xff]
        %v409 = vld [vmem:[%s395 + $0x68] sm:$0xff]
        %v410 = vld [vmem:[%s395 + $0x70] sm:$0xff]
        %v411 = vld [vmem:[%s395 + $0x78] sm:$0xff]
        %412 = vmatpush.msra.mxu0 %v411
        %413 = vmatpush.msra.mxu0 %v410
        %414 = vmatpush.msra.mxu0 %v409
        %415 = vmatpush.msra.mxu0 %v408
        %416 = vmatpush.msra.mxu0 %v407
        %417 = vmatpush.msra.mxu0 %v406
        %418 = vmatpush.msra.mxu0 %v405
        %419 = vmatpush.msra.mxu0 %v404
        %420 = vmatpush.msra.mxu0 %v403
        %421 = vmatpush.msra.mxu0 %v402
        %422 = vmatpush.msra.mxu0 %v401
        %423 = vmatpush.msra.mxu0 %v400
        %424 = vmatpush.msra.mxu0 %v399
        %425 = vmatpush.msra.mxu0 %v398
        %426 = vmatpush.msra.mxu0 %v397
        %427 = vmatpush.msra.mxu0 %v396
        %428 = vmatmul.f32.gmra.mxu0 %v391
        %v429 = vpop.f32.mrf.mxu0
        %v430 = vadd.f32 0.0, %v429
        %431 = vmatmul.f32.gmra.mxu0 %v392
        %v432 = vpop.f32.mrf.mxu0
        %v433 = vadd.f32 0.0, %v432
        %434 = vmatmul.f32.gmra.mxu0 %v393
        %v435 = vpop.f32.mrf.mxu0
        %v436 = vadd.f32 0.0, %v435
        %437 = vmatmul.f32.gmra.mxu0 %v394
        %v438 = vpop.f32.mrf.mxu0
        %v439 = vadd.f32 0.0, %v438
        %440 = vdwg.mxu0
        %v441 = vadd.f32 %v384, %v430
        %v442 = vadd.f32 %v385, %v433
        %v443 = vadd.f32 %v386, %v436
        %v444 = vadd.f32 %v387, %v439
        %v445 = vld [vmem:[%s390 + $0x1] sm:$0xff]
        %v446 = vld [vmem:[%s390 + $0x11] sm:$0xff]
        %v447 = vld [vmem:[%s390 + $0x21] sm:$0xff]
        %v448 = vld [vmem:[%s390 + $0x31] sm:$0xff]
        %s449 = scalar_lea.vmem [#allocation2], 512
        %v450 = vld [vmem:[%s449] sm:$0xff]
        %v451 = vld [vmem:[%s449 + $0x8] sm:$0xff]
        %v452 = vld [vmem:[%s449 + $0x10] sm:$0xff]
        %v453 = vld [vmem:[%s449 + $0x18] sm:$0xff]
        %v454 = vld [vmem:[%s449 + $0x20] sm:$0xff]
        %v455 = vld [vmem:[%s449 + $0x28] sm:$0xff]
        %v456 = vld [vmem:[%s449 + $0x30] sm:$0xff]
        %v457 = vld [vmem:[%s449 + $0x38] sm:$0xff]
        %v458 = vld [vmem:[%s449 + $0x40] sm:$0xff]
        %v459 = vld [vmem:[%s449 + $0x48] sm:$0xff]
        %v460 = vld [vmem:[%s449 + $0x50] sm:$0xff]
        %v461 = vld [vmem:[%s449 + $0x58] sm:$0xff]
        %v462 = vld [vmem:[%s449 + $0x60] sm:$0xff]
        %v463 = vld [vmem:[%s449 + $0x68] sm:$0xff]
        %v464 = vld [vmem:[%s449 + $0x70] sm:$0xff]
        %v465 = vld [vmem:[%s449 + $0x78] sm:$0xff]
        %466 = vmatpush.msra.mxu0 %v465
        %467 = vmatpush.msra.mxu0 %v464
        %468 = vmatpush.msra.mxu0 %v463
        %469 = vmatpush.msra.mxu0 %v462
        %470 = vmatpush.msra.mxu0 %v461
        %471 = vmatpush.msra.mxu0 %v460
        %472 = vmatpush.msra.mxu0 %v459
        %473 = vmatpush.msra.mxu0 %v458
        %474 = vmatpush.msra.mxu0 %v457
        %475 = vmatpush.msra.mxu0 %v456
        %476 = vmatpush.msra.mxu0 %v455
        %477 = vmatpush.msra.mxu0 %v454
        %478 = vmatpush.msra.mxu0 %v453
        %479 = vmatpush.msra.mxu0 %v452
        %480 = vmatpush.msra.mxu0 %v451
        %481 = vmatpush.msra.mxu0 %v450
        %482 = vmatmul.f32.gmra.mxu0 %v445
        %v483 = vpop.f32.mrf.mxu0
        %v484 = vadd.f32 0.0, %v483
        %485 = vmatmul.f32.gmra.mxu0 %v446
        %v486 = vpop.f32.mrf.mxu0
        %v487 = vadd.f32 0.0, %v486
        %488 = vmatmul.f32.gmra.mxu0 %v447
        %v489 = vpop.f32.mrf.mxu0
        %v490 = vadd.f32 0.0, %v489
        %491 = vmatmul.f32.gmra.mxu0 %v448
        %v492 = vpop.f32.mrf.mxu0
        %v493 = vadd.f32 0.0, %v492
        %494 = vdwg.mxu0
        %v495 = vadd.f32 %v441, %v484
        %v496 = vadd.f32 %v442, %v487
        %v497 = vadd.f32 %v443, %v490
        %v498 = vadd.f32 %v444, %v493
        %v499 = vld [vmem:[%s390 + $0x2] sm:$0xff]
        %v500 = vld [vmem:[%s390 + $0x12] sm:$0xff]
        %v501 = vld [vmem:[%s390 + $0x22] sm:$0xff]
        %v502 = vld [vmem:[%s390 + $0x32] sm:$0xff]
        %s503 = scalar_lea.vmem [#allocation2], 640
        %v504 = vld [vmem:[%s503] sm:$0xff]
        %v505 = vld [vmem:[%s503 + $0x8] sm:$0xff]
        %v506 = vld [vmem:[%s503 + $0x10] sm:$0xff]
        %v507 = vld [vmem:[%s503 + $0x18] sm:$0xff]
        %v508 = vld [vmem:[%s503 + $0x20] sm:$0xff]
        %v509 = vld [vmem:[%s503 + $0x28] sm:$0xff]
        %v510 = vld [vmem:[%s503 + $0x30] sm:$0xff]
        %v511 = vld [vmem:[%s503 + $0x38] sm:$0xff]
        %v512 = vld [vmem:[%s503 + $0x40] sm:$0xff]
        %v513 = vld [vmem:[%s503 + $0x48] sm:$0xff]
        %v514 = vld [vmem:[%s503 + $0x50] sm:$0xff]
        %v515 = vld [vmem:[%s503 + $0x58] sm:$0xff]
        %v516 = vld [vmem:[%s503 + $0x60] sm:$0xff]
        %v517 = vld [vmem:[%s503 + $0x68] sm:$0xff]
        %v518 = vld [vmem:[%s503 + $0x70] sm:$0xff]
        %v519 = vld [vmem:[%s503 + $0x78] sm:$0xff]
        %520 = vmatpush.msra.mxu0 %v519
        %521 = vmatpush.msra.mxu0 %v518
        %522 = vmatpush.msra.mxu0 %v517
        %523 = vmatpush.msra.mxu0 %v516
        %524 = vmatpush.msra.mxu0 %v515
        %525 = vmatpush.msra.mxu0 %v514
        %526 = vmatpush.msra.mxu0 %v513
        %527 = vmatpush.msra.mxu0 %v512
        %528 = vmatpush.msra.mxu0 %v511
        %529 = vmatpush.msra.mxu0 %v510
        %530 = vmatpush.msra.mxu0 %v509
        %531 = vmatpush.msra.mxu0 %v508
        %532 = vmatpush.msra.mxu0 %v507
        %533 = vmatpush.msra.mxu0 %v506
        %534 = vmatpush.msra.mxu0 %v505
        %535 = vmatpush.msra.mxu0 %v504
        %536 = vmatmul.f32.gmra.mxu0 %v499
        %v537 = vpop.f32.mrf.mxu0
        %v538 = vadd.f32 0.0, %v537
        %539 = vmatmul.f32.gmra.mxu0 %v500
        %v540 = vpop.f32.mrf.mxu0
        %v541 = vadd.f32 0.0, %v540
        %542 = vmatmul.f32.gmra.mxu0 %v501
        %v543 = vpop.f32.mrf.mxu0
        %v544 = vadd.f32 0.0, %v543
        %545 = vmatmul.f32.gmra.mxu0 %v502
        %v546 = vpop.f32.mrf.mxu0
        %v547 = vadd.f32 0.0, %v546
        %548 = vdwg.mxu0
        %v549 = vadd.f32 %v495, %v538
        %v550 = vadd.f32 %v496, %v541
        %v551 = vadd.f32 %v497, %v544
        %v552 = vadd.f32 %v498, %v547
        %s553 = sadd.s32 %s232, 2
        %s554 = smul.u32 %s553, 16
        %s555 = scalar_lea.vmem %s213, %s554
        %v556 = vld [vmem:[%s555] sm:$0xff]
        %v557 = vld [vmem:[%s555 + $0x10] sm:$0xff]
        %v558 = vld [vmem:[%s555 + $0x20] sm:$0xff]
        %v559 = vld [vmem:[%s555 + $0x30] sm:$0xff]
        %s560 = scalar_lea.vmem [#allocation2], 768
        %v561 = vld [vmem:[%s560] sm:$0xff]
        %v562 = vld [vmem:[%s560 + $0x8] sm:$0xff]
        %v563 = vld [vmem:[%s560 + $0x10] sm:$0xff]
        %v564 = vld [vmem:[%s560 + $0x18] sm:$0xff]
        %v565 = vld [vmem:[%s560 + $0x20] sm:$0xff]
        %v566 = vld [vmem:[%s560 + $0x28] sm:$0xff]
        %v567 = vld [vmem:[%s560 + $0x30] sm:$0xff]
        %v568 = vld [vmem:[%s560 + $0x38] sm:$0xff]
        %v569 = vld [vmem:[%s560 + $0x40] sm:$0xff]
        %v570 = vld [vmem:[%s560 + $0x48] sm:$0xff]
        %v571 = vld [vmem:[%s560 + $0x50] sm:$0xff]
        %v572 = vld [vmem:[%s560 + $0x58] sm:$0xff]
        %v573 = vld [vmem:[%s560 + $0x60] sm:$0xff]
        %v574 = vld [vmem:[%s560 + $0x68] sm:$0xff]
        %v575 = vld [vmem:[%s560 + $0x70] sm:$0xff]
        %v576 = vld [vmem:[%s560 + $0x78] sm:$0xff]
        %577 = vmatpush.msra.mxu0 %v576
        %578 = vmatpush.msra.mxu0 %v575
        %579 = vmatpush.msra.mxu0 %v574
        %580 = vmatpush.msra.mxu0 %v573
        %581 = vmatpush.msra.mxu0 %v572
        %582 = vmatpush.msra.mxu0 %v571
        %583 = vmatpush.msra.mxu0 %v570
        %584 = vmatpush.msra.mxu0 %v569
        %585 = vmatpush.msra.mxu0 %v568
        %586 = vmatpush.msra.mxu0 %v567
        %587 = vmatpush.msra.mxu0 %v566
        %588 = vmatpush.msra.mxu0 %v565
        %589 = vmatpush.msra.mxu0 %v564
        %590 = vmatpush.msra.mxu0 %v563
        %591 = vmatpush.msra.mxu0 %v562
        %592 = vmatpush.msra.mxu0 %v561
        %593 = vmatmul.f32.gmra.mxu0 %v556
        %v594 = vpop.f32.mrf.mxu0
        %v595 = vadd.f32 0.0, %v594
        %596 = vmatmul.f32.gmra.mxu0 %v557
        %v597 = vpop.f32.mrf.mxu0
        %v598 = vadd.f32 0.0, %v597
        %599 = vmatmul.f32.gmra.mxu0 %v558
        %v600 = vpop.f32.mrf.mxu0
        %v601 = vadd.f32 0.0, %v600
        %602 = vmatmul.f32.gmra.mxu0 %v559
        %v603 = vpop.f32.mrf.mxu0
        %v604 = vadd.f32 0.0, %v603
        %605 = vdwg.mxu0
        %v606 = vadd.f32 %v549, %v595
        %v607 = vadd.f32 %v550, %v598
        %v608 = vadd.f32 %v551, %v601
        %v609 = vadd.f32 %v552, %v604
        %v610 = vld [vmem:[%s555 + $0x1] sm:$0xff]
        %v611 = vld [vmem:[%s555 + $0x11] sm:$0xff]
        %v612 = vld [vmem:[%s555 + $0x21] sm:$0xff]
        %v613 = vld [vmem:[%s555 + $0x31] sm:$0xff]
        %s614 = scalar_lea.vmem [#allocation2], 896
        %v615 = vld [vmem:[%s614] sm:$0xff]
        %v616 = vld [vmem:[%s614 + $0x8] sm:$0xff]
        %v617 = vld [vmem:[%s614 + $0x10] sm:$0xff]
        %v618 = vld [vmem:[%s614 + $0x18] sm:$0xff]
        %v619 = vld [vmem:[%s614 + $0x20] sm:$0xff]
        %v620 = vld [vmem:[%s614 + $0x28] sm:$0xff]
        %v621 = vld [vmem:[%s614 + $0x30] sm:$0xff]
        %v622 = vld [vmem:[%s614 + $0x38] sm:$0xff]
        %v623 = vld [vmem:[%s614 + $0x40] sm:$0xff]
        %v624 = vld [vmem:[%s614 + $0x48] sm:$0xff]
        %v625 = vld [vmem:[%s614 + $0x50] sm:$0xff]
        %v626 = vld [vmem:[%s614 + $0x58] sm:$0xff]
        %v627 = vld [vmem:[%s614 + $0x60] sm:$0xff]
        %v628 = vld [vmem:[%s614 + $0x68] sm:$0xff]
        %v629 = vld [vmem:[%s614 + $0x70] sm:$0xff]
        %v630 = vld [vmem:[%s614 + $0x78] sm:$0xff]
        %631 = vmatpush.msra.mxu0 %v630
        %632 = vmatpush.msra.mxu0 %v629
        %633 = vmatpush.msra.mxu0 %v628
        %634 = vmatpush.msra.mxu0 %v627
        %635 = vmatpush.msra.mxu0 %v626
        %636 = vmatpush.msra.mxu0 %v625
        %637 = vmatpush.msra.mxu0 %v624
        %638 = vmatpush.msra.mxu0 %v623
        %639 = vmatpush.msra.mxu0 %v622
        %640 = vmatpush.msra.mxu0 %v621
        %641 = vmatpush.msra.mxu0 %v620
        %642 = vmatpush.msra.mxu0 %v619
        %643 = vmatpush.msra.mxu0 %v618
        %644 = vmatpush.msra.mxu0 %v617
        %645 = vmatpush.msra.mxu0 %v616
        %646 = vmatpush.msra.mxu0 %v615
        %647 = vmatmul.f32.gmra.mxu0 %v610
        %v648 = vpop.f32.mrf.mxu0
        %v649 = vadd.f32 0.0, %v648
        %650 = vmatmul.f32.gmra.mxu0 %v611
        %v651 = vpop.f32.mrf.mxu0
        %v652 = vadd.f32 0.0, %v651
        %653 = vmatmul.f32.gmra.mxu0 %v612
        %v654 = vpop.f32.mrf.mxu0
        %v655 = vadd.f32 0.0, %v654
        %656 = vmatmul.f32.gmra.mxu0 %v613
        %v657 = vpop.f32.mrf.mxu0
        %v658 = vadd.f32 0.0, %v657
        %659 = vdwg.mxu0
        %v660 = vadd.f32 %v606, %v649
        %v661 = vadd.f32 %v607, %v652
        %v662 = vadd.f32 %v608, %v655
        %v663 = vadd.f32 %v609, %v658
        %v664 = vld [vmem:[%s555 + $0x2] sm:$0xff]
        %v665 = vld [vmem:[%s555 + $0x12] sm:$0xff]
        %v666 = vld [vmem:[%s555 + $0x22] sm:$0xff]
        %v667 = vld [vmem:[%s555 + $0x32] sm:$0xff]
        %s668 = scalar_lea.vmem [#allocation2], 1024
        %v669 = vld [vmem:[%s668] sm:$0xff]
        %v670 = vld [vmem:[%s668 + $0x8] sm:$0xff]
        %v671 = vld [vmem:[%s668 + $0x10] sm:$0xff]
        %v672 = vld [vmem:[%s668 + $0x18] sm:$0xff]
        %v673 = vld [vmem:[%s668 + $0x20] sm:$0xff]
        %v674 = vld [vmem:[%s668 + $0x28] sm:$0xff]
        %v675 = vld [vmem:[%s668 + $0x30] sm:$0xff]
        %v676 = vld [vmem:[%s668 + $0x38] sm:$0xff]
        %v677 = vld [vmem:[%s668 + $0x40] sm:$0xff]
        %v678 = vld [vmem:[%s668 + $0x48] sm:$0xff]
        %v679 = vld [vmem:[%s668 + $0x50] sm:$0xff]
        %v680 = vld [vmem:[%s668 + $0x58] sm:$0xff]
        %v681 = vld [vmem:[%s668 + $0x60] sm:$0xff]
        %v682 = vld [vmem:[%s668 + $0x68] sm:$0xff]
        %v683 = vld [vmem:[%s668 + $0x70] sm:$0xff]
        %v684 = vld [vmem:[%s668 + $0x78] sm:$0xff]
        %685 = vmatpush.msra.mxu0 %v684
        %686 = vmatpush.msra.mxu0 %v683
        %687 = vmatpush.msra.mxu0 %v682
        %688 = vmatpush.msra.mxu0 %v681
        %689 = vmatpush.msra.mxu0 %v680
        %690 = vmatpush.msra.mxu0 %v679
        %691 = vmatpush.msra.mxu0 %v678
        %692 = vmatpush.msra.mxu0 %v677
        %693 = vmatpush.msra.mxu0 %v676
        %694 = vmatpush.msra.mxu0 %v675
        %695 = vmatpush.msra.mxu0 %v674
        %696 = vmatpush.msra.mxu0 %v673
        %697 = vmatpush.msra.mxu0 %v672
        %698 = vmatpush.msra.mxu0 %v671
        %699 = vmatpush.msra.mxu0 %v670
        %700 = vmatpush.msra.mxu0 %v669
        %701 = vmatmul.f32.gmra.mxu0 %v664
        %v702 = vpop.f32.mrf.mxu0
        %v703 = vadd.f32 0.0, %v702
        %704 = vmatmul.f32.gmra.mxu0 %v665
        %v705 = vpop.f32.mrf.mxu0
        %v706 = vadd.f32 0.0, %v705
        %707 = vmatmul.f32.gmra.mxu0 %v666
        %v708 = vpop.f32.mrf.mxu0
        %v709 = vadd.f32 0.0, %v708
        %710 = vmatmul.f32.gmra.mxu0 %v667
        %v711 = vpop.f32.mrf.mxu0
        %v712 = vadd.f32 0.0, %v711
        %713 = vdwg.mxu0
        %v714 = vadd.f32 %v660, %v703
        %v715 = vadd.f32 %v661, %v706
        %v716 = vadd.f32 %v662, %v709
        %v717 = vadd.f32 %v663, %v712
        %718 = vst [vmem:[%s222] sm:$0xff] %v714
        %719 = vst [vmem:[%s222 + $0x8] sm:$0xff] %v715
        %720 = vst [vmem:[%s222 + $0x10] sm:$0xff] %v716
        %721 = vst [vmem:[%s222 + $0x18] sm:$0xff] %v717
        %v722 = vadd.f32 %v714, %v715
        %v723 = vadd.f32 %v722, %v716
        %v724 = vadd.f32 %v723, %v717
        %v725 = vrot.slane %v724, 4
        %v726 = vadd.f32 %v724, %v725
        %v727 = vrot.slane %v726, 2
        %v728 = vadd.f32 %v726, %v727
        %v729 = vrot.slane %v728, 1
        %v730 = vadd.f32 %v728, %v729
        %731 = vst [vmem:[%s231] sm:$0x1] %v730
        %v732 = vmul.f32 %v714, %v714
        %v733 = vmul.f32 %v715, %v715
        %v734 = vmul.f32 %v716, %v716
        %v735 = vmul.f32 %v717, %v717
        %v736 = vadd.f32 %v732, %v733
        %v737 = vadd.f32 %v736, %v734
        %v738 = vadd.f32 %v737, %v735
        %v739 = vrot.slane %v738, 4
        %v740 = vadd.f32 %v738, %v739
        %v741 = vrot.slane %v740, 2
        %v742 = vadd.f32 %v740, %v741
        %v743 = vrot.slane %v742, 1
        %v744 = vadd.f32 %v742, %v743
        %745 = vst [vmem:[%s231 + $0x1] sm:$0x1] %v744
        %s746 = smul.u32 4, %s21
        %p747 = scmp.lt.s32.totalorder %s20, 1
        %s748 = scalar_select %p747, %s20, 1
        %p749 = scmp.lt.s32.totalorder %s746, 7
        %s750 = scalar_select %p749, %s746, 7
        %s751 = smul.addr %s748, 8
        %s752 = sadd.s32 %s750, %s751
        %s753 = smul.addr %s752, 8
        %s754 = scalar_lea.vmem %s2, %s753
        %p755 = scmp.lt.s32.totalorder %s20, 1
        %s756 = scalar_select %p755, %s20, 1
        %p757 = scmp.lt.s32.totalorder %s21, 1
        %s758 = scalar_select %p757, %s21, 1
        %s759 = smul.addr %s756, 2
        %s760 = sadd.s32 %s758, %s759
        %s761 = smul.addr %s760, 2
        %s762 = scalar_lea.vmem %s3, %s761
        // Predicated region
        $region33: #{bottleneck_forward.8} parent=27 // pred_check
          %p763 = pneg %p95
        $region34: #{bottleneck_forward.8} parent=27 // pred_check_branch
          %765 = sbr.rel (%p763) target = $region36
        $region35: #{bottleneck_forward.8} parent=27 // pred_region
          %s766 = smul.u32 4, %s21
        $region36: #{bottleneck_forward.8} parent=27 // pred_fallthru
          _
        // Predicated region
        $region37: #{bottleneck_forward.8} parent=27 // pred_check
          %p767 = pneg %p123
        $region38: #{bottleneck_forward.8} parent=27 // pred_check_branch
          %769 = sbr.rel (%p767) target = $region40
        $region39: #{bottleneck_forward.8} parent=27 // pred_region
          _
        $region40: #{bottleneck_forward.8} parent=27 // pred_fallthru
          _
      $region28: #{bottleneck_forward.8} parent=5 // pred_fallthru
        _
      %p770 = scmp.le.s32.totalorder 2, %s11
      // Predicated region
      $region41: #{bottleneck_forward.8} parent=5 // pred_check
        %p771 = pneg %p770
      $region42: #{bottleneck_forward.8} parent=5 // pred_check_branch
        %773 = sbr.rel (%p771) target = $region44
      $region43: #{bottleneck_forward.8} parent=5 // pred_region
        %s774 = ssub.s32 %s11, 2
        // Predicated region
        $region45: #{bottleneck_forward.8} parent=43 // pred_check
          %p775 = pneg %p101
        $region46: #{bottleneck_forward.8} parent=43 // pred_check_branch
          %777 = sbr.rel (%p775) target = $region48
        $region47: #{bottleneck_forward.8} parent=43 // pred_region
          %s778 = smul.u32 4, %s23
          %p779 = scmp.lt.s32.totalorder %s22, 1
          %s780 = scalar_select %p779, %s22, 1
          %p781 = scmp.lt.s32.totalorder %s778, 7
          %s782 = scalar_select %p781, %s778, 7
          %s783 = smul.addr %s780, 8
          %s784 = sadd.s32 %s782, %s783
          %s785 = smul.addr %s784, 8
          %s786 = scalar_lea.vmem %s2, %s785
        $region48: #{bottleneck_forward.8} parent=43 // pred_fallthru
          _
        // Predicated region
        $region49: #{bottleneck_forward.8} parent=43 // pred_check
          %p787 = pneg %p129
        $region50: #{bottleneck_forward.8} parent=43 // pred_check_branch
          %789 = sbr.rel (%p787) target = $region52
        $region51: #{bottleneck_forward.8} parent=43 // pred_region
          %p790 = scmp.lt.s32.totalorder %s22, 1
          %s791 = scalar_select %p790, %s22, 1
          %p792 = scmp.lt.s32.totalorder %s23, 1
          %s793 = scalar_select %p792, %s23, 1
          %s794 = smul.addr %s791, 2
          %s795 = sadd.s32 %s793, %s794
          %s796 = smul.addr %s795, 2
          %s797 = scalar_lea.vmem %s3, %s796
        $region52: #{bottleneck_forward.8} parent=43 // pred_fallthru
          _
      $region44: #{bottleneck_forward.8} parent=5 // pred_fallthru
        _
    $region6: #{bottleneck_forward.8} parent=1 // loop_footer
      %s15 = sadd.s32 1, %s11
    $region7: #{bottleneck_forward.8} parent=1 // loop_footer_branch
      %10 = sbr.rel target = $region3
    $region8: #{bottleneck_forward.8} parent=1 // loop_exit
      _
    %798 = vsyncpa [#allocation3], 1
    %s799 = scalar_lea.sflag [#allocation3], 1
    %800 = vsyncpa %s799, 1

</llo_original>
